<compile_context>
chip_gen: v7x
topology: tpu7x:2x2x1
jax: 0.10.0
libtpu: 0.0.40
codegen_flags: <defaults>
</compile_context>

<pallas_src>
from functools import partial

import numpy as np
import jax
import jax.numpy as jnp
from jax.experimental import pallas as pl
from jax.experimental.pallas import tpu as pltpu


def _feat_encode_kernel(ts_ref, feat_ref, s_ref, wf_ref, wt_ref, bias_ref, out_ref, *,
                        mm_dtype):
    # ts_ref:   (tile_r, G)    f32  G packed edge timestamps per row
    # feat_ref: (tile_r, G*F)       G packed edges' raw features per row (view of (N, F))
    # s_ref:    (G, G*T)       f32  kron(I_G, w_time): time-encode argument expander
    # wf_ref:   (G*F, G*O)          kron(I_G, W[:, :F].T)
    # wt_ref:   (G*T, G*O)          kron(I_G, W[:, F:].T)
    # bias_ref: (1, G*O)       f32  bias tiled G times along lanes
    # out_ref:  (tile_r, G*O)       packed output (bit-identical view of (N, O))
    #
    # The time-argument expansion stays strictly f32 and is pinned to HIGHEST precision:
    # phases reach ~1e2 rad, so a reduced-precision MXU pass would corrupt cos().
    arg = jnp.dot(ts_ref[...], s_ref[...],
                  preferred_element_type=jnp.float32,
                  precision=jax.lax.Precision.HIGHEST)
    time_enc = jnp.cos(arg)                                      # (tile_r, G*T) f32
    # TODO(synk): on v7x, if profiling shows the cos polynomial saturating the VALU after
    # the memory fixes, evaluate a bf16 cos path (v6e/v7x only) or trimming time_dims.
    acc = jnp.dot(feat_ref[...].astype(mm_dtype), wf_ref[...],
                  preferred_element_type=jnp.float32)
    acc = acc + jnp.dot(time_enc.astype(mm_dtype), wt_ref[...],
                        preferred_element_type=jnp.float32)
    out_ref[...] = (acc + bias_ref[...]).astype(out_ref.dtype)


@partial(jax.jit, static_argnames=("tile_n", "use_bf16"))
def feat_encode(edge_ts, edge_feats, w_time, W, b, *, tile_n=8192, use_bf16=False):
    """
    edge_ts:    (N,)     float
    edge_feats: (N, F)   float (f32 or bf16)
    w_time:     (T,)     float   -- TimeEncode frequencies (frozen)
    W:          (O, F+T) float   -- nn.Linear weight (PyTorch convention)
    b:          (O,)     float   -- nn.Linear bias
    returns:    (N, O)   float32 (or bfloat16 when use_bf16=True)
    """
    N = edge_ts.shape[0]
    F = edge_feats.shape[1]
    T = w_time.shape[0]
    O = W.shape[0]

    # Lane-packing factor: pack G consecutive edges into one 128-lane row when possible.
    G = 128 // O if (O <= 128 and 128 % O == 0) else 1
    # TODO(synk): if O does not divide 128 this silently degrades to lane-sparse (G=1)
    # masked stores; padding O wrapper-side to a divisor of 128 would avoid that cliff.

    mm_dtype = jnp.bfloat16 if use_bf16 else jnp.float32
    out_dtype = jnp.bfloat16 if use_bf16 else jnp.float32

    ts = edge_ts.astype(jnp.float32)   # (N,) scalars: 4 B/edge, negligible traffic
    feats = edge_feats                 # streamed at the caller's dtype; no wrapper copy

    # Only the (rare) non-multiple-of-G tail needs padding; tile alignment is handled
    # in-kernel by Pallas' ragged-last-block masking — no pad to a tile multiple and no
    # trailing [:N] slice in the common case.
    rem = N % G
    pad = (G - rem) if rem else 0
    if pad:
        ts = jnp.pad(ts, (0, pad))
        feats = jnp.pad(feats, ((0, pad), (0, 0)))
    Ng = N + pad
    rows = Ng // G

    # Bit-identical lane-dense views: G consecutive edges share one 128-lane row.
    ts_packed = ts.reshape(rows, G)
    feat_packed = feats.reshape(rows, G * F)

    # Row-tile selection:
    #  * big tiles (default 8192 edges) amortize the ~0.35 us per-grid-step overhead,
    #  * 16*G alignment keeps the packed blocks (sublane, lane)-tileable for f32 & bf16,
    #  * when everything fits in one tile but there is enough work, split into >= 2 grid
    #    steps so both v7x TensorCores get work.
    align = 16 * G
    if tile_n % align:
        tile_n = align * pl.cdiv(tile_n, align)
    tile_r = tile_n // G
    if rows <= tile_r:
        if rows >= 64:
            tile_r = 16 * pl.cdiv(pl.cdiv(rows, 2), 16)   # two roughly equal tiles
        else:
            tile_r = rows                                 # single full-extent block
    grid = (pl.cdiv(rows, tile_r),)

    # Wrapper-side weight prep (tiny, traced once under jit).
    eye_g = jnp.eye(G, dtype=jnp.float32)
    wf_pack = jnp.kron(eye_g, W[:, :F].astype(jnp.float32).T).astype(mm_dtype)  # (G*F, G*O)
    wt_pack = jnp.kron(eye_g, W[:, F:].astype(jnp.float32).T).astype(mm_dtype)  # (G*T, G*O)
    s_pack = jnp.kron(eye_g, w_time.reshape(1, T).astype(jnp.float32))          # (G,   G*T) f32
    bias_pack = jnp.tile(b.reshape(1, O).astype(jnp.float32), (1, G))           # (1,   G*O) f32

    in_bytes = jnp.dtype(feats.dtype).itemsize
    out_bytes = jnp.dtype(out_dtype).itemsize
    cost = pl.CostEstimate(
        flops=2 * Ng * ((F + T) * O + T),
        transcendentals=Ng * T,
        bytes_accessed=(4 * Ng                      # timestamps
                        + in_bytes * Ng * F         # edge features
                        + out_bytes * Ng * O        # output
                        + jnp.dtype(mm_dtype).itemsize * (wf_pack.size + wt_pack.size)
                        + 4 * (s_pack.size + bias_pack.size)),
    )

    out_packed = pl.pallas_call(
        partial(_feat_encode_kernel, mm_dtype=mm_dtype),
        out_shape=jax.ShapeDtypeStruct((rows, G * O), out_dtype),
        grid=grid,
        in_specs=[
            pl.BlockSpec((tile_r, G), lambda i: (i, 0)),          # packed timestamps
            pl.BlockSpec((tile_r, G * F), lambda i: (i, 0)),      # packed edge features
            pl.BlockSpec((G, G * T), lambda i: (0, 0)),           # time-frequency expander
            pl.BlockSpec((G * F, G * O), lambda i: (0, 0)),       # block-diag feat weight
            pl.BlockSpec((G * T, G * O), lambda i: (0, 0)),       # block-diag time weight
            pl.BlockSpec((1, G * O), lambda i: (0, 0)),           # packed bias
        ],
        out_specs=pl.BlockSpec((tile_r, G * O), lambda i: (i, 0)),
        # TODO(synk): if xprof shows exposed DMA at very large tiles, sweep
        # pipeline_mode=pl.Buffered(3) on the feat in_spec / out_spec.
        compiler_params=pltpu.CompilerParams(
            dimension_semantics=("parallel",),
            vmem_limit_bytes=32 * 1024 * 1024,
        ),
        cost_estimate=cost,
    )(ts_packed, feat_packed, s_pack, wf_pack, wt_pack, bias_pack)

    out = out_packed.reshape(Ng, O)
    if pad:
        out = out[:N]          # only on the rare non-multiple-of-G path
    return out


def reference(edge_ts, edge_feats, w_time, W, b):
    time_enc = jnp.cos(edge_ts[:, None] * w_time[None, :])
    x = jnp.concatenate([edge_feats, time_enc], axis=1)
    return x @ W.T + b[None, :]


if __name__ == "__main__":
    # Small shapes consistent with the module's forward.
    N = 300            # NOT a multiple of any tile -> exercises the ragged last block
    time_dims = 32
    feat_dims = 32
    out_dims = 32

    key = jax.random.PRNGKey(0)
    k_ts, k_feat, k_W, k_b = jax.random.split(key, 4)

    edge_ts = jax.random.uniform(k_ts, (N,), dtype=jnp.float32) * 100.0
    edge_feats = jax.random.normal(k_feat, (N, feat_dims), dtype=jnp.float32)

    # TimeEncode fixed (non-trainable) frequencies: 1 / 10 ** linspace(0, 9, time_dims)
    w_time = jnp.asarray(1.0 / 10.0 ** np.linspace(0, 9, time_dims), dtype=jnp.float32)

    # feat_encoder Linear(time_dims + feat_dims -> out_dims)
    in_dims = time_dims + feat_dims
    bound = 1.0 / np.sqrt(in_dims)
    W = jax.random.uniform(k_W, (out_dims, in_dims), dtype=jnp.float32,
                           minval=-bound, maxval=bound)
    b = jax.random.uniform(k_b, (out_dims,), dtype=jnp.float32,
                           minval=-bound, maxval=bound)

    ref = reference(edge_ts, edge_feats, w_time, W, b)

    # Default (perf) path: f32, big tiles, >=2 grid steps, no pad / no slice.
    out = jax.block_until_ready(feat_encode(edge_ts, edge_feats, w_time, W, b))
    assert out.shape == (N, out_dims) and out.dtype == jnp.float32
    np.testing.assert_allclose(np.asarray(out), np.asarray(ref), rtol=1e-5, atol=1e-5)

    # Small tiling: multi-step grid + ragged (masked) last block, still no wrapper pad.
    out_small = jax.block_until_ready(
        feat_encode(edge_ts, edge_feats, w_time, W, b, tile_n=128))
    np.testing.assert_allclose(np.asarray(out_small), np.asarray(ref), rtol=1e-5, atol=1e-5)

    # Edge count not a multiple of the lane-packing factor G: exercises the rare
    # small-pad (+ slice) fallback path.
    N_odd = 297
    out_odd = jax.block_until_ready(
        feat_encode(edge_ts[:N_odd], edge_feats[:N_odd], w_time, W, b))
    np.testing.assert_allclose(np.asarray(out_odd), np.asarray(ref[:N_odd]),
                               rtol=1e-5, atol=1e-5)

    # bf16 I/O path: bf16 feats / weights / output, f32 accumulation; ts/cos stay f32.
    out_bf16 = jax.block_until_ready(
        feat_encode(edge_ts, edge_feats.astype(jnp.bfloat16), w_time, W, b, use_bf16=True))
    assert out_bf16.dtype == jnp.bfloat16
    np.testing.assert_allclose(np.asarray(out_bf16, dtype=np.float32), np.asarray(ref),
                               rtol=2e-2, atol=5e-2)

    print("KERNEL_OK")
</pallas_src>

<mosaic_0001>
module attributes {stable_mosaic.version = 11 : i64} {
  func.func @_feat_encode_kernel(%arg0: i32, %arg1: memref<48x4xf32, #tpu.memory_space<vmem>>, %arg2: memref<48x128xf32, #tpu.memory_space<vmem>>, %arg3: memref<4x128xf32, #tpu.memory_space<vmem>>, %arg4: memref<128x128xf32, #tpu.memory_space<vmem>>, %arg5: memref<128x128xf32, #tpu.memory_space<vmem>>, %arg6: memref<1x128xf32, #tpu.memory_space<vmem>>, %arg7: memref<48x128xf32, #tpu.memory_space<vmem>>) attributes {dimension_semantics = [#tpu.dimension_semantics<parallel>], iteration_bounds = array<i64: 2>, scalar_prefetch = 0 : i64, scratch_operands = 0 : i64, tpu.core_type = #tpu.core_type<tc>, window_params = [{transform_indices = @transform_0, window_bounds = array<i64: 48, 4>}, {transform_indices = @transform_1, window_bounds = array<i64: 48, 128>}, {pipeline_mode = #tpu.pipeline_mode<synchronous>, transform_indices = @transform_2, window_bounds = array<i64: 4, 128>}, {pipeline_mode = #tpu.pipeline_mode<synchronous>, transform_indices = @transform_3, window_bounds = array<i64: 128, 128>}, {pipeline_mode = #tpu.pipeline_mode<synchronous>, transform_indices = @transform_4, window_bounds = array<i64: 128, 128>}, {pipeline_mode = #tpu.pipeline_mode<synchronous>, transform_indices = @transform_5, window_bounds = array<i64: 1, 128>}, {transform_indices = @transform_6, window_bounds = array<i64: 48, 128>}]} {
    %c0 = arith.constant 0 : index
    %c0_0 = arith.constant 0 : index
    %0 = vector.load %arg1[%c0, %c0_0] : memref<48x4xf32, #tpu.memory_space<vmem>>, vector<48x4xf32>
    %c0_1 = arith.constant 0 : index
    %c0_2 = arith.constant 0 : index
    %1 = vector.load %arg3[%c0_1, %c0_2] : memref<4x128xf32, #tpu.memory_space<vmem>>, vector<4x128xf32>
    %cst = arith.constant dense<0.000000e+00> : vector<48x128xf32>
    %2 = tpu.matmul %0, %1, %cst {dimension_numbers = #tpu.dot_dimension_numbers<[1], [0], [0], [1], [0, 0, 1, 1], [], []>, precision = #tpu.contract_precision<fp32>} : vector<48x4xf32>, vector<4x128xf32>, vector<48x128xf32> -> vector<48x128xf32>
    %3 = math.cos %2 : vector<48x128xf32>
    %c0_3 = arith.constant 0 : index
    %c0_4 = arith.constant 0 : index
    %4 = vector.load %arg2[%c0_3, %c0_4] : memref<48x128xf32, #tpu.memory_space<vmem>>, vector<48x128xf32>
    %c0_5 = arith.constant 0 : index
    %c0_6 = arith.constant 0 : index
    %5 = vector.load %arg4[%c0_5, %c0_6] : memref<128x128xf32, #tpu.memory_space<vmem>>, vector<128x128xf32>
    %cst_7 = arith.constant dense<0.000000e+00> : vector<48x128xf32>
    %6 = tpu.matmul %4, %5, %cst_7 {dimension_numbers = #tpu.dot_dimension_numbers<[1], [0], [0], [1], [0, 0, 1, 1], [], []>} : vector<48x128xf32>, vector<128x128xf32>, vector<48x128xf32> -> vector<48x128xf32>
    %c0_8 = arith.constant 0 : index
    %c0_9 = arith.constant 0 : index
    %7 = vector.load %arg5[%c0_8, %c0_9] : memref<128x128xf32, #tpu.memory_space<vmem>>, vector<128x128xf32>
    %cst_10 = arith.constant dense<0.000000e+00> : vector<48x128xf32>
    %8 = tpu.matmul %3, %7, %cst_10 {dimension_numbers = #tpu.dot_dimension_numbers<[1], [0], [0], [1], [0, 0, 1, 1], [], []>} : vector<48x128xf32>, vector<128x128xf32>, vector<48x128xf32> -> vector<48x128xf32>
    %9 = arith.addf %6, %8 : vector<48x128xf32>
    %c0_11 = arith.constant 0 : index
    %c0_12 = arith.constant 0 : index
    %10 = vector.load %arg6[%c0_11, %c0_12] : memref<1x128xf32, #tpu.memory_space<vmem>>, vector<1x128xf32>
    %11 = vector.broadcast %10 : vector<1x128xf32> to vector<48x128xf32>
    %12 = arith.addf %9, %11 : vector<48x128xf32>
    %c0_13 = arith.constant 0 : index
    %c0_14 = arith.constant 0 : index
    %13 = vector.load %arg7[%c0_13, %c0_14] : memref<48x128xf32, #tpu.memory_space<vmem>>, vector<48x128xf32>
    tpu.vector_store %arg7[%c0_13, %c0_14], %12 {strides = array<i32>} : memref<48x128xf32, #tpu.memory_space<vmem>>, vector<48x128xf32>,
    return
  }
  func.func @transform_0(%arg0: i32) -> (i32, i32) {
    %c0_i32 = arith.constant 0 : i32
    %c0_i32_0 = arith.constant 0 : i32
    return %arg0, %c0_i32 : i32, i32
  }
  func.func @transform_1(%arg0: i32) -> (i32, i32) {
    %c0_i32 = arith.constant 0 : i32
    %c0_i32_0 = arith.constant 0 : i32
    return %arg0, %c0_i32 : i32, i32
  }
  func.func @transform_2(%arg0: i32) -> (i32, i32) {
    %c0_i32 = arith.constant 0 : i32
    %c0_i32_0 = arith.constant 0 : i32
    %c0_i32_1 = arith.constant 0 : i32
    return %c0_i32, %c0_i32_0 : i32, i32
  }
  func.func @transform_3(%arg0: i32) -> (i32, i32) {
    %c0_i32 = arith.constant 0 : i32
    %c0_i32_0 = arith.constant 0 : i32
    %c0_i32_1 = arith.constant 0 : i32
    return %c0_i32, %c0_i32_0 : i32, i32
  }
  func.func @transform_4(%arg0: i32) -> (i32, i32) {
    %c0_i32 = arith.constant 0 : i32
    %c0_i32_0 = arith.constant 0 : i32
    %c0_i32_1 = arith.constant 0 : i32
    return %c0_i32, %c0_i32_0 : i32, i32
  }
  func.func @transform_5(%arg0: i32) -> (i32, i32) {
    %c0_i32 = arith.constant 0 : i32
    %c0_i32_0 = arith.constant 0 : i32
    %c0_i32_1 = arith.constant 0 : i32
    return %c0_i32, %c0_i32_0 : i32, i32
  }
  func.func @transform_6(%arg0: i32) -> (i32, i32) {
    %c0_i32 = arith.constant 0 : i32
    %c0_i32_0 = arith.constant 0 : i32
    return %arg0, %c0_i32 : i32, i32
  }
}

</mosaic_0001>

<llo_original>
// kernel: feat_encode.1
$region0: #{feat_encode.1}
  #allocation0 [shape = 'u32[]', space=smem, size = 0x4, offset = 0x4, fixed_abs, tag = 'smem constant byte address 0x4 - core index']
  #allocation1 [shape = 'u32[144,128]{1,0:T(1,128)}', space=vmem, size = 0x12000, scoped, tag = 'internal scratch']
  %s0 = inlined_call_operand.vmem [shape: f32[75,4], index: 0, kind: input, shape index: {}]
  %s1 = inlined_call_operand.vmem [shape: f32[75,128], index: 1, kind: input, shape index: {}]
  %s2 = inlined_call_operand.vmem [shape: f32[4,128], index: 2, kind: input, shape index: {}]
  %s3 = inlined_call_operand.vmem [shape: f32[128,128], index: 3, kind: input, shape index: {}]
  %s4 = inlined_call_operand.vmem [shape: f32[128,128], index: 4, kind: input, shape index: {}]
  %s5 = inlined_call_operand.vmem [shape: f32[1,128], index: 5, kind: input, shape index: {}]
  %s6 = inlined_call_operand.vmem [shape: f32[75,128], index: 6, kind: output, shape index: {}]
  %s7 = sld [smem:[#allocation0]]
  $region105: #{feat_encode.1} parent=0
    _
  %s9 = ssub.s32 1, %s7
  %s10 = scalar_select 0, %s9, %s7
  $region1: #{feat_encode.1} parent=0
    #allocation2 [shape = 'u8[49152]{0}', space=vmem, size = 0xc000, scoped, tag = 'output window, operand 0']
    loop: start=0, step=1, limit=4
    $region2: #{feat_encode.1} parent=1 // loop_pre_header
      _
    $region3: #{feat_encode.1} parent=1 // loop_header
      %s12 = sphi 0, %s16
      %p13 = scmp.ge.s32.totalorder %s12, 4
      %s22 = sphi 0, %s24
      %s25 = sphi 0, %s22
      %s26 = sphi 0, %s25
      %s42 = sphi 0, %s26
      %s48 = sphi 0, %s50
      %s51 = sphi 0, %s48
      %s52 = sphi 0, %s51
      %s68 = sphi 0, %s52
      %s72 = sphi 0, %s72
      %s74 = sphi 0, %s72
      %s75 = sphi 0, %s74
      %s89 = sphi 0, %s75
      %s93 = sphi 0, %s93
      %s95 = sphi 0, %s93
      %s96 = sphi 0, %s95
      %s110 = sphi 0, %s96
      %s114 = sphi 0, %s114
      %s116 = sphi 0, %s114
      %s117 = sphi 0, %s116
      %s131 = sphi 0, %s117
      %s135 = sphi 0, %s135
      %s137 = sphi 0, %s135
      %s138 = sphi 0, %s137
      %s152 = sphi 0, %s138
      %s158 = sphi 0, %s160
      %s161 = sphi 0, %s158
      %s162 = sphi 0, %s161
      %s178 = sphi 0, %s162
    $region4: #{feat_encode.1} parent=1 // loop_header_branch
      %15 = sbr.rel (%p13) target = $region8
    $region5: #{feat_encode.1} parent=1 // loop_body
      %s17 = ssub.s32 %s12, 1
      %s18 = ssub.s32 %s12, 2
      %s19 = sadd.s32 %s12, 1
      %s20 = ssub.s32 %s12, %s19
      %p21 = scmp.eq.s32.totalorder %s20, 0
      %s23 = sadd.s32 %s22, 1
      %s24 = scalar_select %p21, %s22, %s23
      %p27 = pneg %p21
      %p28 = scmp.eq.s32.totalorder %s12, 1
      %p29 = por %p27, %p28
      %p30 = scmp.ne.s32.totalorder %s22, %s25
      %p31 = scmp.eq.s32.totalorder %s12, 0
      %p32 = por %p30, %p31
      %p33 = scmp.ne.s32.totalorder %s22, %s25
      %p34 = scmp.eq.s32.totalorder %s17, 1
      %p35 = por %p33, %p34
      %p36 = scmp.ne.s32.totalorder %s25, %s26
      %p37 = scmp.eq.s32.totalorder %s17, 0
      %p38 = por %p36, %p37
      %p39 = scmp.ne.s32.totalorder %s25, %s26
      %p40 = scmp.eq.s32.totalorder %s18, 1
      %p41 = por %p39, %p40
      %p43 = scmp.ne.s32.totalorder %s26, %s42
      %p44 = scmp.eq.s32.totalorder %s18, 0
      %p45 = por %p43, %p44
      %s46 = ssub.s32 %s12, %s19
      %p47 = scmp.eq.s32.totalorder %s46, 0
      %s49 = sadd.s32 %s48, 1
      %s50 = scalar_select %p47, %s48, %s49
      %p53 = pneg %p47
      %p54 = scmp.eq.s32.totalorder %s12, 1
      %p55 = por %p53, %p54
      %p56 = scmp.ne.s32.totalorder %s48, %s51
      %p57 = scmp.eq.s32.totalorder %s12, 0
      %p58 = por %p56, %p57
      %p59 = scmp.ne.s32.totalorder %s48, %s51
      %p60 = scmp.eq.s32.totalorder %s17, 1
      %p61 = por %p59, %p60
      %p62 = scmp.ne.s32.totalorder %s51, %s52
      %p63 = scmp.eq.s32.totalorder %s17, 0
      %p64 = por %p62, %p63
      %p65 = scmp.ne.s32.totalorder %s51, %s52
      %p66 = scmp.eq.s32.totalorder %s18, 1
      %p67 = por %p65, %p66
      %p69 = scmp.ne.s32.totalorder %s52, %s68
      %p70 = scmp.eq.s32.totalorder %s18, 0
      %p71 = por %p69, %p70
      %s73 = sadd.s32 %s72, 1
      %p76 = scmp.eq.s32.totalorder %s12, 1
      %p77 = scmp.ne.s32.totalorder %s72, %s74
      %p78 = scmp.eq.s32.totalorder %s12, 0
      %p79 = por %p77, %p78
      %p80 = scmp.ne.s32.totalorder %s72, %s74
      %p81 = scmp.eq.s32.totalorder %s17, 1
      %p82 = por %p80, %p81
      %p83 = scmp.ne.s32.totalorder %s74, %s75
      %p84 = scmp.eq.s32.totalorder %s17, 0
      %p85 = por %p83, %p84
      %p86 = scmp.ne.s32.totalorder %s74, %s75
      %p87 = scmp.eq.s32.totalorder %s18, 1
      %p88 = por %p86, %p87
      %p90 = scmp.ne.s32.totalorder %s75, %s89
      %p91 = scmp.eq.s32.totalorder %s18, 0
      %p92 = por %p90, %p91
      %s94 = sadd.s32 %s93, 1
      %p97 = scmp.eq.s32.totalorder %s12, 1
      %p98 = scmp.ne.s32.totalorder %s93, %s95
      %p99 = scmp.eq.s32.totalorder %s12, 0
      %p100 = por %p98, %p99
      %p101 = scmp.ne.s32.totalorder %s93, %s95
      %p102 = scmp.eq.s32.totalorder %s17, 1
      %p103 = por %p101, %p102
      %p104 = scmp.ne.s32.totalorder %s95, %s96
      %p105 = scmp.eq.s32.totalorder %s17, 0
      %p106 = por %p104, %p105
      %p107 = scmp.ne.s32.totalorder %s95, %s96
      %p108 = scmp.eq.s32.totalorder %s18, 1
      %p109 = por %p107, %p108
      %p111 = scmp.ne.s32.totalorder %s96, %s110
      %p112 = scmp.eq.s32.totalorder %s18, 0
      %p113 = por %p111, %p112
      %s115 = sadd.s32 %s114, 1
      %p118 = scmp.eq.s32.totalorder %s12, 1
      %p119 = scmp.ne.s32.totalorder %s114, %s116
      %p120 = scmp.eq.s32.totalorder %s12, 0
      %p121 = por %p119, %p120
      %p122 = scmp.ne.s32.totalorder %s114, %s116
      %p123 = scmp.eq.s32.totalorder %s17, 1
      %p124 = por %p122, %p123
      %p125 = scmp.ne.s32.totalorder %s116, %s117
      %p126 = scmp.eq.s32.totalorder %s17, 0
      %p127 = por %p125, %p126
      %p128 = scmp.ne.s32.totalorder %s116, %s117
      %p129 = scmp.eq.s32.totalorder %s18, 1
      %p130 = por %p128, %p129
      %p132 = scmp.ne.s32.totalorder %s117, %s131
      %p133 = scmp.eq.s32.totalorder %s18, 0
      %p134 = por %p132, %p133
      %s136 = sadd.s32 %s135, 1
      %p139 = scmp.eq.s32.totalorder %s12, 1
      %p140 = scmp.ne.s32.totalorder %s135, %s137
      %p141 = scmp.eq.s32.totalorder %s12, 0
      %p142 = por %p140, %p141
      %p143 = scmp.ne.s32.totalorder %s135, %s137
      %p144 = scmp.eq.s32.totalorder %s17, 1
      %p145 = por %p143, %p144
      %p146 = scmp.ne.s32.totalorder %s137, %s138
      %p147 = scmp.eq.s32.totalorder %s17, 0
      %p148 = por %p146, %p147
      %p149 = scmp.ne.s32.totalorder %s137, %s138
      %p150 = scmp.eq.s32.totalorder %s18, 1
      %p151 = por %p149, %p150
      %p153 = scmp.ne.s32.totalorder %s138, %s152
      %p154 = scmp.eq.s32.totalorder %s18, 0
      %p155 = por %p153, %p154
      %s156 = ssub.s32 %s12, %s19
      %p157 = scmp.eq.s32.totalorder %s156, 0
      %s159 = sadd.s32 %s158, 1
      %s160 = scalar_select %p157, %s158, %s159
      %p163 = pneg %p157
      %p164 = scmp.eq.s32.totalorder %s12, 1
      %p165 = por %p163, %p164
      %p166 = scmp.ne.s32.totalorder %s158, %s161
      %p167 = scmp.eq.s32.totalorder %s12, 0
      %p168 = por %p166, %p167
      %p169 = scmp.ne.s32.totalorder %s158, %s161
      %p170 = scmp.eq.s32.totalorder %s17, 1
      %p171 = por %p169, %p170
      %p172 = scmp.ne.s32.totalorder %s161, %s162
      %p173 = scmp.eq.s32.totalorder %s17, 0
      %p174 = por %p172, %p173
      %p175 = scmp.ne.s32.totalorder %s161, %s162
      %p176 = scmp.eq.s32.totalorder %s18, 1
      %p177 = por %p175, %p176
      %p179 = scmp.ne.s32.totalorder %s162, %s178
      %p180 = scmp.eq.s32.totalorder %s18, 0
      %p181 = por %p179, %p180
      %p182 = scmp.le.s32.totalorder 1, %s12
      %p183 = scmp.lt.s32.totalorder %s12, 3
      %p184 = pnand %p182, %p183
      %p185 = pneg %p184
      // Predicated region
      $region9: #{feat_encode.1} parent=5 // pred_check
        _
      $region10: #{feat_encode.1} parent=5 // pred_check_branch
        %187 = sbr.rel (%p184) target = $region12
      $region11: #{feat_encode.1} parent=5 // pred_region
        %s188 = ssub.s32 %s12, 1
        // Predicated region
        $region13: #{feat_encode.1} parent=11 // pred_check
          %p189 = pneg %p85
        $region14: #{feat_encode.1} parent=11 // pred_check_branch
          %191 = sbr.rel (%p189) target = $region16
        $region15: #{feat_encode.1} parent=11 // pred_region
          _
        $region16: #{feat_encode.1} parent=11 // pred_fallthru
          _
        // Predicated region
        $region17: #{feat_encode.1} parent=11 // pred_check
          %p192 = pneg %p106
        $region18: #{feat_encode.1} parent=11 // pred_check_branch
          %194 = sbr.rel (%p192) target = $region20
        $region19: #{feat_encode.1} parent=11 // pred_region
          _
        $region20: #{feat_encode.1} parent=11 // pred_fallthru
          _
        // Predicated region
        $region21: #{feat_encode.1} parent=11 // pred_check
          %p195 = pneg %p127
        $region22: #{feat_encode.1} parent=11 // pred_check_branch
          %197 = sbr.rel (%p195) target = $region24
        $region23: #{feat_encode.1} parent=11 // pred_region
          _
        $region24: #{feat_encode.1} parent=11 // pred_fallthru
          _
        // Predicated region
        $region25: #{feat_encode.1} parent=11 // pred_check
          %p198 = pneg %p148
        $region26: #{feat_encode.1} parent=11 // pred_check_branch
          %200 = sbr.rel (%p198) target = $region28
        $region27: #{feat_encode.1} parent=11 // pred_region
          _
        $region28: #{feat_encode.1} parent=11 // pred_fallthru
          _
      $region12: #{feat_encode.1} parent=5 // pred_fallthru
        _
      %p201 = scmp.lt.s32.totalorder %s12, 2
      // Predicated region
      $region29: #{feat_encode.1} parent=5 // pred_check
        %p202 = pneg %p201
      $region30: #{feat_encode.1} parent=5 // pred_check_branch
        %204 = sbr.rel (%p202) target = $region32
      $region31: #{feat_encode.1} parent=5 // pred_region
        // Predicated region
        $region33: #{feat_encode.1} parent=31 // pred_check
          %p205 = pneg %p32
        $region34: #{feat_encode.1} parent=31 // pred_check_branch
          %207 = sbr.rel (%p205) target = $region36
        $region35: #{feat_encode.1} parent=31 // pred_region
          %s208 = smul.u32 6, %s12
          %s209 = ssub.s32 10, %s208
          %p210 = scmp.lt.s32.totalorder %s209, 6
          %s211 = scalar_select %p210, %s209, 6
          %s212 = smul.u32 128, %s211
          %p213 = scmp.lt.s32.totalorder %s208, 9
          %s214 = scalar_select %p213, %s208, 9
          %s215 = smul.addr %s214, 8
          %s216 = scalar_lea.vmem %s0, %s215
          %s217 = smul.u32 6, %s12
          %s218 = ssub.s32 10, %s217
          %p219 = scmp.lt.s32.totalorder %s218, 6
          %s220 = scalar_select %p219, %s218, 6
          %s221 = smul.u32 128, %s220
        $region36: #{feat_encode.1} parent=31 // pred_fallthru
          _
        // Predicated region
        $region37: #{feat_encode.1} parent=31 // pred_check
          %p222 = pneg %p58
        $region38: #{feat_encode.1} parent=31 // pred_check_branch
          %224 = sbr.rel (%p222) target = $region40
        $region39: #{feat_encode.1} parent=31 // pred_region
          %s225 = smul.u32 6, %s12
          %s226 = ssub.s32 10, %s225
          %p227 = scmp.lt.s32.totalorder %s226, 6
          %s228 = scalar_select %p227, %s226, 6
          %s229 = smul.u32 128, %s228
          %p230 = scmp.lt.s32.totalorder %s225, 9
          %s231 = scalar_select %p230, %s225, 9
          %s232 = smul.addr %s231, 8
          %s233 = scalar_lea.vmem %s1, %s232
          %s234 = smul.u32 6, %s12
          %s235 = ssub.s32 10, %s234
          %p236 = scmp.lt.s32.totalorder %s235, 6
          %s237 = scalar_select %p236, %s235, 6
          %s238 = smul.u32 128, %s237
        $region40: #{feat_encode.1} parent=31 // pred_fallthru
          _
      $region32: #{feat_encode.1} parent=5 // pred_fallthru
        _
      %p239 = scmp.le.s32.totalorder 1, %s12
      %p240 = scmp.lt.s32.totalorder %s12, 3
      %p241 = pnand %p239, %p240
      %p242 = pneg %p241
      // Predicated region
      $region41: #{feat_encode.1} parent=5 // pred_check
        _
      $region42: #{feat_encode.1} parent=5 // pred_check_branch
        %244 = sbr.rel (%p241) target = $region44
      $region43: #{feat_encode.1} parent=5 // pred_region
        %s245 = ssub.s32 %s12, 1
        %s246 = smul.u32 6, %s17
        %s247 = ssub.s32 10, %s246
        %p248 = scmp.lt.s32.totalorder %s247, 6
        %s249 = scalar_select %p248, %s247, 6
        %s250 = smul.u32 128, %s249
        %p251 = scmp.lt.s32.totalorder %s246, 9
        %s252 = scalar_select %p251, %s246, 9
        %s253 = smul.addr %s252, 8
        %s254 = scalar_lea.vmem %s0, %s253
        %p255 = pneg %p38
        %p256 = pneg %p35
        %s257 = smul.u32 6, %s17
        %s258 = ssub.s32 10, %s257
        %p259 = scmp.lt.s32.totalorder %s258, 6
        %s260 = scalar_select %p259, %s258, 6
        %s261 = smul.u32 128, %s260
        %p262 = scmp.lt.s32.totalorder %s257, 9
        %s263 = scalar_select %p262, %s257, 9
        %s264 = smul.addr %s263, 8
        %s265 = scalar_lea.vmem %s1, %s264
        %p266 = pneg %p64
        %p267 = pneg %p61
        %p268 = pneg %p85
        %p269 = pneg %p82
        %p270 = pneg %p106
        %p271 = pneg %p103
        %p272 = pneg %p127
        %p273 = pneg %p124
        %p274 = pneg %p148
        %p275 = pneg %p145
        %p276 = pneg %p174
        %p277 = pneg %p171
        %s278 = sand.u32 %s161, 1
        %s279 = sand.u32 %s161, 1
        %s280 = smul.addr %s279, 48
        %s281 = scalar_lea.vmem [#allocation2], %s280
        %s282 = smul.u32 6, %s17
        %s283 = ssub.s32 10, %s282
        %p284 = scmp.lt.s32.totalorder %s283, 6
        %s285 = scalar_select %p284, %s283, 6
        %s286 = smul.u32 128, %s285
        %p287 = scmp.lt.s32.totalorder %s282, 9
        %s288 = scalar_select %p287, %s282, 9
        %s289 = smul.addr %s288, 8
        %s290 = scalar_lea.vmem %s0, %s289
        %s291 = smul.u32 6, %s17
        %s292 = ssub.s32 10, %s291
        %p293 = scmp.lt.s32.totalorder %s292, 6
        %s294 = scalar_select %p293, %s292, 6
        %s295 = smul.u32 128, %s294
        %s296 = smul.u32 6, %s17
        %s297 = ssub.s32 10, %s296
        %p298 = scmp.lt.s32.totalorder %s297, 6
        %s299 = scalar_select %p298, %s297, 6
        %s300 = smul.u32 128, %s299
        %p301 = scmp.lt.s32.totalorder %s296, 9
        %s302 = scalar_select %p301, %s296, 9
        %s303 = smul.addr %s302, 8
        %s304 = scalar_lea.vmem %s1, %s303
        %s305 = smul.u32 6, %s17
        %s306 = ssub.s32 10, %s305
        %p307 = scmp.lt.s32.totalorder %s306, 6
        %s308 = scalar_select %p307, %s306, 6
        %s309 = smul.u32 128, %s308
        %s310 = smul.u32 6, %s17
        %s311 = ssub.s32 10, %s310
        %p312 = scmp.lt.s32.totalorder %s311, 6
        %s313 = scalar_select %p312, %s311, 6
        %s314 = smul.u32 128, %s313
        %v315 = vld [vmem:[%s290] sm:$0xff]
        %v316 = vld [vmem:[%s290 + $0x8] sm:$0xff]
        %v317 = vld [vmem:[%s290 + $0x10] sm:$0xff]
        %v318 = vld [vmem:[%s290 + $0x18] sm:$0xff]
        %v319 = vld [vmem:[%s290 + $0x20] sm:$0xff]
        %v320 = vld [vmem:[%s290 + $0x28] sm:$0xff]
        %v321 = vld [vmem:[%s2] sm:$0xf]
        %vm322 = vcmask 31744
        %v324 = vsel %vm322, %v315, 0
        %v327 = vsel %vm322, %v316, 0
        %v330 = vsel %vm322, %v317, 0
        %v333 = vsel %vm322, %v318, 0
        %v336 = vsel %vm322, %v319, 0
        %v339 = vsel %vm322, %v320, 0
        %vm341 = vcmask 1043456
        %v343 = vsel %vm341, %v321, 0
        %345 = vmatprep.subr.mxu0 0.0
        %v346 = vand.u32 %v343, 4294901760
        %347 = vmatpush1.msra.mxu0 %v346
        %348 = vmatprep.subr.mxu0 0.0
        %349 = vmatpush1.msra.mxu0 0.0
        %350 = vmatprep.subr.mxu0 0.0
        %351 = vmatpush1.msra.mxu0 0.0
        %352 = vmatprep.subr.mxu0 0.0
        %353 = vmatpush1.msra.mxu0 0.0
        %354 = vmatprep.subr.mxu0 0.0
        %355 = vmatpush1.msra.mxu0 0.0
        %356 = vmatprep.subr.mxu0 0.0
        %357 = vmatpush1.msra.mxu0 0.0
        %358 = vmatprep.subr.mxu0 0.0
        %359 = vmatpush1.msra.mxu0 0.0
        %360 = vmatprep.subr.mxu0 0.0
        %361 = vmatpush1.msra.mxu0 0.0
        %362 = vmatprep.subr.mxu0 0.0
        %363 = vmatpush1.msra.mxu0 0.0
        %364 = vmatprep.subr.mxu0 0.0
        %365 = vmatpush1.msra.mxu0 0.0
        %366 = vmatprep.subr.mxu0 0.0
        %367 = vmatpush1.msra.mxu0 0.0
        %368 = vmatprep.subr.mxu0 0.0
        %369 = vmatpush1.msra.mxu0 0.0
        %370 = vmatprep.subr.mxu0 0.0
        %371 = vmatpush1.msra.mxu0 0.0
        %372 = vmatprep.subr.mxu0 0.0
        %373 = vmatpush1.msra.mxu0 0.0
        %374 = vmatprep.subr.mxu0 0.0
        %375 = vmatpush1.msra.mxu0 0.0
        %376 = vmatprep.subr.mxu0 0.0
        %377 = vmatpush1.msra.mxu0 0.0
        %378 = vmatprep.subr.mxu0 0.0
        %379 = vmatpush1.msra.mxu0 0.0
        %380 = vmatprep.subr.mxu0 0.0
        %381 = vmatpush1.msra.mxu0 0.0
        %382 = vmatprep.subr.mxu0 0.0
        %383 = vmatpush1.msra.mxu0 0.0
        %384 = vmatprep.subr.mxu0 0.0
        %385 = vmatpush1.msra.mxu0 0.0
        %386 = vmatprep.subr.mxu0 0.0
        %387 = vmatpush1.msra.mxu0 0.0
        %388 = vmatprep.subr.mxu0 0.0
        %389 = vmatpush1.msra.mxu0 0.0
        %390 = vmatprep.subr.mxu0 0.0
        %391 = vmatpush1.msra.mxu0 0.0
        %392 = vmatprep.subr.mxu0 0.0
        %393 = vmatpush1.msra.mxu0 0.0
        %394 = vmatprep.subr.mxu0 0.0
        %395 = vmatpush1.msra.mxu0 0.0
        %396 = vmatprep.subr.mxu0 0.0
        %397 = vmatpush1.msra.mxu0 0.0
        %398 = vmatprep.subr.mxu0 0.0
        %399 = vmatpush1.msra.mxu0 0.0
        %400 = vmatprep.subr.mxu0 0.0
        %401 = vmatpush1.msra.mxu0 0.0
        %402 = vmatprep.subr.mxu0 0.0
        %403 = vmatpush1.msra.mxu0 0.0
        %404 = vmatprep.subr.mxu0 0.0
        %405 = vmatpush1.msra.mxu0 0.0
        %406 = vmatprep.subr.mxu0 0.0
        %407 = vmatpush1.msra.mxu0 0.0
        %408 = vmatprep.subr.mxu0 0.0
        %409 = vmatpush1.msra.mxu0 0.0
        %410 = vmatprep.mubr.f32.mxu0 0.0
        %v411 = vand.u32 %v324, 4294901760
        %v412 = vsub.f32 %v324, %v411
        %v413 = vand.u32 %v412, 4294901760
        %v414 = vsub.f32 %v412, %v413
        %v415 = vand.u32 %v414, 4294901760
        %416 = vmatmul.mubr.f32.gmra.mrb[0].mxu0 %v415
        %v417 = vpop.f32.mrb[0].mxu0
        %v418 = vadd.f32 0.0, %v417
        %v419 = vpop.f32.mrb[0].mxu0
        %420 = vmatprep.mubr.f32.mxu0 0.0
        %v421 = vand.u32 %v327, 4294901760
        %v422 = vsub.f32 %v327, %v421
        %v423 = vand.u32 %v422, 4294901760
        %v424 = vsub.f32 %v422, %v423
        %v425 = vand.u32 %v424, 4294901760
        %426 = vmatmul.mubr.f32.gmra.mrb[0].mxu0 %v425
        %v427 = vpop.f32.mrb[0].mxu0
        %v428 = vadd.f32 0.0, %v427
        %v429 = vpop.f32.mrb[0].mxu0
        %430 = vmatprep.mubr.f32.mxu0 0.0
        %v431 = vand.u32 %v330, 4294901760
        %v432 = vsub.f32 %v330, %v431
        %v433 = vand.u32 %v432, 4294901760
        %v434 = vsub.f32 %v432, %v433
        %v435 = vand.u32 %v434, 4294901760
        %436 = vmatmul.mubr.f32.gmra.mrb[0].mxu0 %v435
        %v437 = vpop.f32.mrb[0].mxu0
        %v438 = vadd.f32 0.0, %v437
        %v439 = vpop.f32.mrb[0].mxu0
        %440 = vmatprep.mubr.f32.mxu0 0.0
        %v441 = vand.u32 %v333, 4294901760
        %v442 = vsub.f32 %v333, %v441
        %v443 = vand.u32 %v442, 4294901760
        %v444 = vsub.f32 %v442, %v443
        %v445 = vand.u32 %v444, 4294901760
        %446 = vmatmul.mubr.f32.gmra.mrb[0].mxu0 %v445
        %v447 = vpop.f32.mrb[0].mxu0
        %v448 = vadd.f32 0.0, %v447
        %v449 = vpop.f32.mrb[0].mxu0
        %450 = vmatprep.mubr.f32.mxu0 0.0
        %v451 = vand.u32 %v336, 4294901760
        %v452 = vsub.f32 %v336, %v451
        %v453 = vand.u32 %v452, 4294901760
        %v454 = vsub.f32 %v452, %v453
        %v455 = vand.u32 %v454, 4294901760
        %456 = vmatmul.mubr.f32.gmra.mrb[0].mxu0 %v455
        %v457 = vpop.f32.mrb[0].mxu0
        %v458 = vadd.f32 0.0, %v457
        %v459 = vpop.f32.mrb[0].mxu0
        %460 = vmatprep.mubr.f32.mxu0 0.0
        %v461 = vand.u32 %v339, 4294901760
        %v462 = vsub.f32 %v339, %v461
        %v463 = vand.u32 %v462, 4294901760
        %v464 = vsub.f32 %v462, %v463
        %v465 = vand.u32 %v464, 4294901760
        %466 = vmatmul.mubr.f32.gmra.mrb[0].mxu0 %v465
        %v467 = vpop.f32.mrb[0].mxu0
        %v468 = vadd.f32 0.0, %v467
        %v469 = vpop.f32.mrb[0].mxu0
        %470 = vdwg.mxu0
        %471 = vmatprep.subr.mxu0 0.0
        %v472 = vand.u32 %v343, 4294901760
        %v473 = vsub.f32 %v343, %v472
        %v474 = vand.u32 %v473, 4294901760
        %v475 = vsub.f32 %v473, %v474
        %v476 = vand.u32 %v475, 4294901760
        %477 = vmatpush1.msra.mxu0 %v476
        %478 = vmatprep.subr.mxu0 0.0
        %479 = vmatpush1.msra.mxu0 0.0
        %480 = vmatprep.subr.mxu0 0.0
        %481 = vmatpush1.msra.mxu0 0.0
        %482 = vmatprep.subr.mxu0 0.0
        %483 = vmatpush1.msra.mxu0 0.0
        %484 = vmatprep.subr.mxu0 0.0
        %485 = vmatpush1.msra.mxu0 0.0
        %486 = vmatprep.subr.mxu0 0.0
        %487 = vmatpush1.msra.mxu0 0.0
        %488 = vmatprep.subr.mxu0 0.0
        %489 = vmatpush1.msra.mxu0 0.0
        %490 = vmatprep.subr.mxu0 0.0
        %491 = vmatpush1.msra.mxu0 0.0
        %492 = vmatprep.subr.mxu0 0.0
        %493 = vmatpush1.msra.mxu0 0.0
        %494 = vmatprep.subr.mxu0 0.0
        %495 = vmatpush1.msra.mxu0 0.0
        %496 = vmatprep.subr.mxu0 0.0
        %497 = vmatpush1.msra.mxu0 0.0
        %498 = vmatprep.subr.mxu0 0.0
        %499 = vmatpush1.msra.mxu0 0.0
        %500 = vmatprep.subr.mxu0 0.0
        %501 = vmatpush1.msra.mxu0 0.0
        %502 = vmatprep.subr.mxu0 0.0
        %503 = vmatpush1.msra.mxu0 0.0
        %504 = vmatprep.subr.mxu0 0.0
        %505 = vmatpush1.msra.mxu0 0.0
        %506 = vmatprep.subr.mxu0 0.0
        %507 = vmatpush1.msra.mxu0 0.0
        %508 = vmatprep.subr.mxu0 0.0
        %509 = vmatpush1.msra.mxu0 0.0
        %510 = vmatprep.subr.mxu0 0.0
        %511 = vmatpush1.msra.mxu0 0.0
        %512 = vmatprep.subr.mxu0 0.0
        %513 = vmatpush1.msra.mxu0 0.0
        %514 = vmatprep.subr.mxu0 0.0
        %515 = vmatpush1.msra.mxu0 0.0
        %516 = vmatprep.subr.mxu0 0.0
        %517 = vmatpush1.msra.mxu0 0.0
        %518 = vmatprep.subr.mxu0 0.0
        %519 = vmatpush1.msra.mxu0 0.0
        %520 = vmatprep.subr.mxu0 0.0
        %521 = vmatpush1.msra.mxu0 0.0
        %522 = vmatprep.subr.mxu0 0.0
        %523 = vmatpush1.msra.mxu0 0.0
        %524 = vmatprep.subr.mxu0 0.0
        %525 = vmatpush1.msra.mxu0 0.0
        %526 = vmatprep.subr.mxu0 0.0
        %527 = vmatpush1.msra.mxu0 0.0
        %528 = vmatprep.subr.mxu0 0.0
        %529 = vmatpush1.msra.mxu0 0.0
        %530 = vmatprep.subr.mxu0 0.0
        %531 = vmatpush1.msra.mxu0 0.0
        %532 = vmatprep.subr.mxu0 0.0
        %533 = vmatpush1.msra.mxu0 0.0
        %534 = vmatprep.subr.mxu0 0.0
        %535 = vmatpush1.msra.mxu0 0.0
        %536 = vmatprep.subr.mxu0 0.0
        %537 = vmatpush1.msra.mxu0 0.0
        %538 = vmatprep.subr.mxu0 0.0
        %539 = vmatpush1.msra.mxu0 0.0
        %540 = vmatprep.mubr.f32.mxu0 0.0
        %v541 = vand.u32 %v324, 4294901760
        %542 = vmatmul.mubr.f32.gmra.mrb[0].mxu0 %v541
        %v543 = vpop.f32.mrb[0].mxu0
        %v544 = vadd.f32 %v418, %v543
        %v545 = vpop.f32.mrb[0].mxu0
        %546 = vmatprep.mubr.f32.mxu0 0.0
        %v547 = vand.u32 %v327, 4294901760
        %548 = vmatmul.mubr.f32.gmra.mrb[0].mxu0 %v547
        %v549 = vpop.f32.mrb[0].mxu0
        %v550 = vadd.f32 %v428, %v549
        %v551 = vpop.f32.mrb[0].mxu0
        %552 = vmatprep.mubr.f32.mxu0 0.0
        %v553 = vand.u32 %v330, 4294901760
        %554 = vmatmul.mubr.f32.gmra.mrb[0].mxu0 %v553
        %v555 = vpop.f32.mrb[0].mxu0
        %v556 = vadd.f32 %v438, %v555
        %v557 = vpop.f32.mrb[0].mxu0
        %558 = vmatprep.mubr.f32.mxu0 0.0
        %v559 = vand.u32 %v333, 4294901760
        %560 = vmatmul.mubr.f32.gmra.mrb[0].mxu0 %v559
        %v561 = vpop.f32.mrb[0].mxu0
        %v562 = vadd.f32 %v448, %v561
        %v563 = vpop.f32.mrb[0].mxu0
        %564 = vmatprep.mubr.f32.mxu0 0.0
        %v565 = vand.u32 %v336, 4294901760
        %566 = vmatmul.mubr.f32.gmra.mrb[0].mxu0 %v565
        %v567 = vpop.f32.mrb[0].mxu0
        %v568 = vadd.f32 %v458, %v567
        %v569 = vpop.f32.mrb[0].mxu0
        %570 = vmatprep.mubr.f32.mxu0 0.0
        %v571 = vand.u32 %v339, 4294901760
        %572 = vmatmul.mubr.f32.gmra.mrb[0].mxu0 %v571
        %v573 = vpop.f32.mrb[0].mxu0
        %v574 = vadd.f32 %v468, %v573
        %v575 = vpop.f32.mrb[0].mxu0
        %576 = vdwg.mxu0
        %577 = vmatprep.subr.mxu0 0.0
        %v578 = vand.u32 %v343, 4294901760
        %v579 = vsub.f32 %v343, %v578
        %580 = vmatpush1.msra.mxu0 %v579
        %581 = vmatprep.subr.mxu0 0.0
        %582 = vmatpush1.msra.mxu0 0.0
        %583 = vmatprep.subr.mxu0 0.0
        %584 = vmatpush1.msra.mxu0 0.0
        %585 = vmatprep.subr.mxu0 0.0
        %586 = vmatpush1.msra.mxu0 0.0
        %587 = vmatprep.subr.mxu0 0.0
        %588 = vmatpush1.msra.mxu0 0.0
        %589 = vmatprep.subr.mxu0 0.0
        %590 = vmatpush1.msra.mxu0 0.0
        %591 = vmatprep.subr.mxu0 0.0
        %592 = vmatpush1.msra.mxu0 0.0
        %593 = vmatprep.subr.mxu0 0.0
        %594 = vmatpush1.msra.mxu0 0.0
        %595 = vmatprep.subr.mxu0 0.0
        %596 = vmatpush1.msra.mxu0 0.0
        %597 = vmatprep.subr.mxu0 0.0
        %598 = vmatpush1.msra.mxu0 0.0
        %599 = vmatprep.subr.mxu0 0.0
        %600 = vmatpush1.msra.mxu0 0.0
        %601 = vmatprep.subr.mxu0 0.0
        %602 = vmatpush1.msra.mxu0 0.0
        %603 = vmatprep.subr.mxu0 0.0
        %604 = vmatpush1.msra.mxu0 0.0
        %605 = vmatprep.subr.mxu0 0.0
        %606 = vmatpush1.msra.mxu0 0.0
        %607 = vmatprep.subr.mxu0 0.0
        %608 = vmatpush1.msra.mxu0 0.0
        %609 = vmatprep.subr.mxu0 0.0
        %610 = vmatpush1.msra.mxu0 0.0
        %611 = vmatprep.subr.mxu0 0.0
        %612 = vmatpush1.msra.mxu0 0.0
        %613 = vmatprep.subr.mxu0 0.0
        %614 = vmatpush1.msra.mxu0 0.0
        %615 = vmatprep.subr.mxu0 0.0
        %616 = vmatpush1.msra.mxu0 0.0
        %617 = vmatprep.subr.mxu0 0.0
        %618 = vmatpush1.msra.mxu0 0.0
        %619 = vmatprep.subr.mxu0 0.0
        %620 = vmatpush1.msra.mxu0 0.0
        %621 = vmatprep.subr.mxu0 0.0
        %622 = vmatpush1.msra.mxu0 0.0
        %623 = vmatprep.subr.mxu0 0.0
        %624 = vmatpush1.msra.mxu0 0.0
        %625 = vmatprep.subr.mxu0 0.0
        %626 = vmatpush1.msra.mxu0 0.0
        %627 = vmatprep.subr.mxu0 0.0
        %628 = vmatpush1.msra.mxu0 0.0
        %629 = vmatprep.subr.mxu0 0.0
        %630 = vmatpush1.msra.mxu0 0.0
        %631 = vmatprep.subr.mxu0 0.0
        %632 = vmatpush1.msra.mxu0 0.0
        %633 = vmatprep.subr.mxu0 0.0
        %634 = vmatpush1.msra.mxu0 0.0
        %635 = vmatprep.subr.mxu0 0.0
        %636 = vmatpush1.msra.mxu0 0.0
        %637 = vmatprep.subr.mxu0 0.0
        %638 = vmatpush1.msra.mxu0 0.0
        %639 = vmatprep.subr.mxu0 0.0
        %640 = vmatpush1.msra.mxu0 0.0
        %641 = vmatprep.subr.mxu0 0.0
        %642 = vmatpush1.msra.mxu0 0.0
        %643 = vmatprep.mubr.f32.mxu0 0.0
        %v644 = vand.u32 %v324, 4294901760
        %v645 = vsub.f32 %v324, %v644
        %646 = vmatmul.mubr.f32.gmra.mrb[0].mxu0 %v645
        %v647 = vpop.f32.mrb[0].mxu0
        %v648 = vadd.f32 %v544, %v647
        %v649 = vpop.f32.mrb[0].mxu0
        %650 = vmatprep.mubr.f32.mxu0 0.0
        %v651 = vand.u32 %v327, 4294901760
        %v652 = vsub.f32 %v327, %v651
        %653 = vmatmul.mubr.f32.gmra.mrb[0].mxu0 %v652
        %v654 = vpop.f32.mrb[0].mxu0
        %v655 = vadd.f32 %v550, %v654
        %v656 = vpop.f32.mrb[0].mxu0
        %657 = vmatprep.mubr.f32.mxu0 0.0
        %v658 = vand.u32 %v330, 4294901760
        %v659 = vsub.f32 %v330, %v658
        %660 = vmatmul.mubr.f32.gmra.mrb[0].mxu0 %v659
        %v661 = vpop.f32.mrb[0].mxu0
        %v662 = vadd.f32 %v556, %v661
        %v663 = vpop.f32.mrb[0].mxu0
        %664 = vmatprep.mubr.f32.mxu0 0.0
        %v665 = vand.u32 %v333, 4294901760
        %v666 = vsub.f32 %v333, %v665
        %667 = vmatmul.mubr.f32.gmra.mrb[0].mxu0 %v666
        %v668 = vpop.f32.mrb[0].mxu0
        %v669 = vadd.f32 %v562, %v668
        %v670 = vpop.f32.mrb[0].mxu0
        %671 = vmatprep.mubr.f32.mxu0 0.0
        %v672 = vand.u32 %v336, 4294901760
        %v673 = vsub.f32 %v336, %v672
        %674 = vmatmul.mubr.f32.gmra.mrb[0].mxu0 %v673
        %v675 = vpop.f32.mrb[0].mxu0
        %v676 = vadd.f32 %v568, %v675
        %v677 = vpop.f32.mrb[0].mxu0
        %678 = vmatprep.mubr.f32.mxu0 0.0
        %v679 = vand.u32 %v339, 4294901760
        %v680 = vsub.f32 %v339, %v679
        %681 = vmatmul.mubr.f32.gmra.mrb[0].mxu0 %v680
        %v682 = vpop.f32.mrb[0].mxu0
        %v683 = vadd.f32 %v574, %v682
        %v684 = vpop.f32.mrb[0].mxu0
        %685 = vdwg.mxu0
        %686 = vmatprep.subr.mxu0 0.0
        %v687 = vand.u32 %v343, 4294901760
        %688 = vmatpush1.msra.mxu0 %v687
        %689 = vmatprep.subr.mxu0 0.0
        %690 = vmatpush1.msra.mxu0 0.0
        %691 = vmatprep.subr.mxu0 0.0
        %692 = vmatpush1.msra.mxu0 0.0
        %693 = vmatprep.subr.mxu0 0.0
        %694 = vmatpush1.msra.mxu0 0.0
        %695 = vmatprep.subr.mxu0 0.0
        %696 = vmatpush1.msra.mxu0 0.0
        %697 = vmatprep.subr.mxu0 0.0
        %698 = vmatpush1.msra.mxu0 0.0
        %699 = vmatprep.subr.mxu0 0.0
        %700 = vmatpush1.msra.mxu0 0.0
        %701 = vmatprep.subr.mxu0 0.0
        %702 = vmatpush1.msra.mxu0 0.0
        %703 = vmatprep.subr.mxu0 0.0
        %704 = vmatpush1.msra.mxu0 0.0
        %705 = vmatprep.subr.mxu0 0.0
        %706 = vmatpush1.msra.mxu0 0.0
        %707 = vmatprep.subr.mxu0 0.0
        %708 = vmatpush1.msra.mxu0 0.0
        %709 = vmatprep.subr.mxu0 0.0
        %710 = vmatpush1.msra.mxu0 0.0
        %711 = vmatprep.subr.mxu0 0.0
        %712 = vmatpush1.msra.mxu0 0.0
        %713 = vmatprep.subr.mxu0 0.0
        %714 = vmatpush1.msra.mxu0 0.0
        %715 = vmatprep.subr.mxu0 0.0
        %716 = vmatpush1.msra.mxu0 0.0
        %717 = vmatprep.subr.mxu0 0.0
        %718 = vmatpush1.msra.mxu0 0.0
        %719 = vmatprep.subr.mxu0 0.0
        %720 = vmatpush1.msra.mxu0 0.0
        %721 = vmatprep.subr.mxu0 0.0
        %722 = vmatpush1.msra.mxu0 0.0
        %723 = vmatprep.subr.mxu0 0.0
        %724 = vmatpush1.msra.mxu0 0.0
        %725 = vmatprep.subr.mxu0 0.0
        %726 = vmatpush1.msra.mxu0 0.0
        %727 = vmatprep.subr.mxu0 0.0
        %728 = vmatpush1.msra.mxu0 0.0
        %729 = vmatprep.subr.mxu0 0.0
        %730 = vmatpush1.msra.mxu0 0.0
        %731 = vmatprep.subr.mxu0 0.0
        %732 = vmatpush1.msra.mxu0 0.0
        %733 = vmatprep.subr.mxu0 0.0
        %734 = vmatpush1.msra.mxu0 0.0
        %735 = vmatprep.subr.mxu0 0.0
        %736 = vmatpush1.msra.mxu0 0.0
        %737 = vmatprep.subr.mxu0 0.0
        %738 = vmatpush1.msra.mxu0 0.0
        %739 = vmatprep.subr.mxu0 0.0
        %740 = vmatpush1.msra.mxu0 0.0
        %741 = vmatprep.subr.mxu0 0.0
        %742 = vmatpush1.msra.mxu0 0.0
        %743 = vmatprep.subr.mxu0 0.0
        %744 = vmatpush1.msra.mxu0 0.0
        %745 = vmatprep.subr.mxu0 0.0
        %746 = vmatpush1.msra.mxu0 0.0
        %747 = vmatprep.subr.mxu0 0.0
        %748 = vmatpush1.msra.mxu0 0.0
        %749 = vmatprep.subr.mxu0 0.0
        %750 = vmatpush1.msra.mxu0 0.0
        %751 = vmatprep.mubr.f32.mxu0 0.0
        %v752 = vand.u32 %v324, 4294901760
        %v753 = vsub.f32 %v324, %v752
        %v754 = vand.u32 %v753, 4294901760
        %755 = vmatmul.mubr.f32.gmra.mrb[0].mxu0 %v754
        %v756 = vpop.f32.mrb[0].mxu0
        %v757 = vadd.f32 %v648, %v756
        %v758 = vpop.f32.mrb[0].mxu0
        %759 = vmatprep.mubr.f32.mxu0 0.0
        %v760 = vand.u32 %v327, 4294901760
        %v761 = vsub.f32 %v327, %v760
        %v762 = vand.u32 %v761, 4294901760
        %763 = vmatmul.mubr.f32.gmra.mrb[0].mxu0 %v762
        %v764 = vpop.f32.mrb[0].mxu0
        %v765 = vadd.f32 %v655, %v764
        %v766 = vpop.f32.mrb[0].mxu0
        %767 = vmatprep.mubr.f32.mxu0 0.0
        %v768 = vand.u32 %v330, 4294901760
        %v769 = vsub.f32 %v330, %v768
        %v770 = vand.u32 %v769, 4294901760
        %771 = vmatmul.mubr.f32.gmra.mrb[0].mxu0 %v770
        %v772 = vpop.f32.mrb[0].mxu0
        %v773 = vadd.f32 %v662, %v772
        %v774 = vpop.f32.mrb[0].mxu0
        %775 = vmatprep.mubr.f32.mxu0 0.0
        %v776 = vand.u32 %v333, 4294901760
        %v777 = vsub.f32 %v333, %v776
        %v778 = vand.u32 %v777, 4294901760
        %779 = vmatmul.mubr.f32.gmra.mrb[0].mxu0 %v778
        %v780 = vpop.f32.mrb[0].mxu0
        %v781 = vadd.f32 %v669, %v780
        %v782 = vpop.f32.mrb[0].mxu0
        %783 = vmatprep.mubr.f32.mxu0 0.0
        %v784 = vand.u32 %v336, 4294901760
        %v785 = vsub.f32 %v336, %v784
        %v786 = vand.u32 %v785, 4294901760
        %787 = vmatmul.mubr.f32.gmra.mrb[0].mxu0 %v786
        %v788 = vpop.f32.mrb[0].mxu0
        %v789 = vadd.f32 %v676, %v788
        %v790 = vpop.f32.mrb[0].mxu0
        %791 = vmatprep.mubr.f32.mxu0 0.0
        %v792 = vand.u32 %v339, 4294901760
        %v793 = vsub.f32 %v339, %v792
        %v794 = vand.u32 %v793, 4294901760
        %795 = vmatmul.mubr.f32.gmra.mrb[0].mxu0 %v794
        %v796 = vpop.f32.mrb[0].mxu0
        %v797 = vadd.f32 %v683, %v796
        %v798 = vpop.f32.mrb[0].mxu0
        %799 = vdwg.mxu0
        %800 = vmatprep.subr.mxu0 0.0
        %v801 = vand.u32 %v343, 4294901760
        %v802 = vsub.f32 %v343, %v801
        %v803 = vand.u32 %v802, 4294901760
        %804 = vmatpush1.msra.mxu0 %v803
        %805 = vmatprep.subr.mxu0 0.0
        %806 = vmatpush1.msra.mxu0 0.0
        %807 = vmatprep.subr.mxu0 0.0
        %808 = vmatpush1.msra.mxu0 0.0
        %809 = vmatprep.subr.mxu0 0.0
        %810 = vmatpush1.msra.mxu0 0.0
        %811 = vmatprep.subr.mxu0 0.0
        %812 = vmatpush1.msra.mxu0 0.0
        %813 = vmatprep.subr.mxu0 0.0
        %814 = vmatpush1.msra.mxu0 0.0
        %815 = vmatprep.subr.mxu0 0.0
        %816 = vmatpush1.msra.mxu0 0.0
        %817 = vmatprep.subr.mxu0 0.0
        %818 = vmatpush1.msra.mxu0 0.0
        %819 = vmatprep.subr.mxu0 0.0
        %820 = vmatpush1.msra.mxu0 0.0
        %821 = vmatprep.subr.mxu0 0.0
        %822 = vmatpush1.msra.mxu0 0.0
        %823 = vmatprep.subr.mxu0 0.0
        %824 = vmatpush1.msra.mxu0 0.0
        %825 = vmatprep.subr.mxu0 0.0
        %826 = vmatpush1.msra.mxu0 0.0
        %827 = vmatprep.subr.mxu0 0.0
        %828 = vmatpush1.msra.mxu0 0.0
        %829 = vmatprep.subr.mxu0 0.0
        %830 = vmatpush1.msra.mxu0 0.0
        %831 = vmatprep.subr.mxu0 0.0
        %832 = vmatpush1.msra.mxu0 0.0
        %833 = vmatprep.subr.mxu0 0.0
        %834 = vmatpush1.msra.mxu0 0.0
        %835 = vmatprep.subr.mxu0 0.0
        %836 = vmatpush1.msra.mxu0 0.0
        %837 = vmatprep.subr.mxu0 0.0
        %838 = vmatpush1.msra.mxu0 0.0
        %839 = vmatprep.subr.mxu0 0.0
        %840 = vmatpush1.msra.mxu0 0.0
        %841 = vmatprep.subr.mxu0 0.0
        %842 = vmatpush1.msra.mxu0 0.0
        %843 = vmatprep.subr.mxu0 0.0
        %844 = vmatpush1.msra.mxu0 0.0
        %845 = vmatprep.subr.mxu0 0.0
        %846 = vmatpush1.msra.mxu0 0.0
        %847 = vmatprep.subr.mxu0 0.0
        %848 = vmatpush1.msra.mxu0 0.0
        %849 = vmatprep.subr.mxu0 0.0
        %850 = vmatpush1.msra.mxu0 0.0
        %851 = vmatprep.subr.mxu0 0.0
        %852 = vmatpush1.msra.mxu0 0.0
        %853 = vmatprep.subr.mxu0 0.0
        %854 = vmatpush1.msra.mxu0 0.0
        %855 = vmatprep.subr.mxu0 0.0
        %856 = vmatpush1.msra.mxu0 0.0
        %857 = vmatprep.subr.mxu0 0.0
        %858 = vmatpush1.msra.mxu0 0.0
        %859 = vmatprep.subr.mxu0 0.0
        %860 = vmatpush1.msra.mxu0 0.0
        %861 = vmatprep.subr.mxu0 0.0
        %862 = vmatpush1.msra.mxu0 0.0
        %863 = vmatprep.subr.mxu0 0.0
        %864 = vmatpush1.msra.mxu0 0.0
        %865 = vmatprep.subr.mxu0 0.0
        %866 = vmatpush1.msra.mxu0 0.0
        %867 = vmatprep.mubr.f32.mxu0 0.0
        %v868 = vand.u32 %v324, 4294901760
        %869 = vmatmul.mubr.f32.gmra.mrb[0].mxu0 %v868
        %v870 = vpop.f32.mrb[0].mxu0
        %v871 = vadd.f32 %v757, %v870
        %v872 = vpop.f32.mrb[0].mxu0
        %873 = vmatprep.mubr.f32.mxu0 0.0
        %v874 = vand.u32 %v327, 4294901760
        %875 = vmatmul.mubr.f32.gmra.mrb[0].mxu0 %v874
        %v876 = vpop.f32.mrb[0].mxu0
        %v877 = vadd.f32 %v765, %v876
        %v878 = vpop.f32.mrb[0].mxu0
        %879 = vmatprep.mubr.f32.mxu0 0.0
        %v880 = vand.u32 %v330, 4294901760
        %881 = vmatmul.mubr.f32.gmra.mrb[0].mxu0 %v880
        %v882 = vpop.f32.mrb[0].mxu0
        %v883 = vadd.f32 %v773, %v882
        %v884 = vpop.f32.mrb[0].mxu0
        %885 = vmatprep.mubr.f32.mxu0 0.0
        %v886 = vand.u32 %v333, 4294901760
        %887 = vmatmul.mubr.f32.gmra.mrb[0].mxu0 %v886
        %v888 = vpop.f32.mrb[0].mxu0
        %v889 = vadd.f32 %v781, %v888
        %v890 = vpop.f32.mrb[0].mxu0
        %891 = vmatprep.mubr.f32.mxu0 0.0
        %v892 = vand.u32 %v336, 4294901760
        %893 = vmatmul.mubr.f32.gmra.mrb[0].mxu0 %v892
        %v894 = vpop.f32.mrb[0].mxu0
        %v895 = vadd.f32 %v789, %v894
        %v896 = vpop.f32.mrb[0].mxu0
        %897 = vmatprep.mubr.f32.mxu0 0.0
        %v898 = vand.u32 %v339, 4294901760
        %899 = vmatmul.mubr.f32.gmra.mrb[0].mxu0 %v898
        %v900 = vpop.f32.mrb[0].mxu0
        %v901 = vadd.f32 %v797, %v900
        %v902 = vpop.f32.mrb[0].mxu0
        %903 = vdwg.mxu0
        %904 = vmatprep.subr.mxu0 0.0
        %v905 = vand.u32 %v343, 4294901760
        %906 = vmatpush1.msra.mxu0 %v905
        %907 = vmatprep.subr.mxu0 0.0
        %908 = vmatpush1.msra.mxu0 0.0
        %909 = vmatprep.subr.mxu0 0.0
        %910 = vmatpush1.msra.mxu0 0.0
        %911 = vmatprep.subr.mxu0 0.0
        %912 = vmatpush1.msra.mxu0 0.0
        %913 = vmatprep.subr.mxu0 0.0
        %914 = vmatpush1.msra.mxu0 0.0
        %915 = vmatprep.subr.mxu0 0.0
        %916 = vmatpush1.msra.mxu0 0.0
        %917 = vmatprep.subr.mxu0 0.0
        %918 = vmatpush1.msra.mxu0 0.0
        %919 = vmatprep.subr.mxu0 0.0
        %920 = vmatpush1.msra.mxu0 0.0
        %921 = vmatprep.subr.mxu0 0.0
        %922 = vmatpush1.msra.mxu0 0.0
        %923 = vmatprep.subr.mxu0 0.0
        %924 = vmatpush1.msra.mxu0 0.0
        %925 = vmatprep.subr.mxu0 0.0
        %926 = vmatpush1.msra.mxu0 0.0
        %927 = vmatprep.subr.mxu0 0.0
        %928 = vmatpush1.msra.mxu0 0.0
        %929 = vmatprep.subr.mxu0 0.0
        %930 = vmatpush1.msra.mxu0 0.0
        %931 = vmatprep.subr.mxu0 0.0
        %932 = vmatpush1.msra.mxu0 0.0
        %933 = vmatprep.subr.mxu0 0.0
        %934 = vmatpush1.msra.mxu0 0.0
        %935 = vmatprep.subr.mxu0 0.0
        %936 = vmatpush1.msra.mxu0 0.0
        %937 = vmatprep.subr.mxu0 0.0
        %938 = vmatpush1.msra.mxu0 0.0
        %939 = vmatprep.subr.mxu0 0.0
        %940 = vmatpush1.msra.mxu0 0.0
        %941 = vmatprep.subr.mxu0 0.0
        %942 = vmatpush1.msra.mxu0 0.0
        %943 = vmatprep.subr.mxu0 0.0
        %944 = vmatpush1.msra.mxu0 0.0
        %945 = vmatprep.subr.mxu0 0.0
        %946 = vmatpush1.msra.mxu0 0.0
        %947 = vmatprep.subr.mxu0 0.0
        %948 = vmatpush1.msra.mxu0 0.0
        %949 = vmatprep.subr.mxu0 0.0
        %950 = vmatpush1.msra.mxu0 0.0
        %951 = vmatprep.subr.mxu0 0.0
        %952 = vmatpush1.msra.mxu0 0.0
        %953 = vmatprep.subr.mxu0 0.0
        %954 = vmatpush1.msra.mxu0 0.0
        %955 = vmatprep.subr.mxu0 0.0
        %956 = vmatpush1.msra.mxu0 0.0
        %957 = vmatprep.subr.mxu0 0.0
        %958 = vmatpush1.msra.mxu0 0.0
        %959 = vmatprep.subr.mxu0 0.0
        %960 = vmatpush1.msra.mxu0 0.0
        %961 = vmatprep.subr.mxu0 0.0
        %962 = vmatpush1.msra.mxu0 0.0
        %963 = vmatprep.subr.mxu0 0.0
        %964 = vmatpush1.msra.mxu0 0.0
        %965 = vmatprep.subr.mxu0 0.0
        %966 = vmatpush1.msra.mxu0 0.0
        %967 = vmatprep.subr.mxu0 0.0
        %968 = vmatpush1.msra.mxu0 0.0
        %969 = vmatprep.mubr.f32.mxu0 0.0
        %v970 = vand.u32 %v324, 4294901760
        %971 = vmatmul.mubr.f32.gmra.mrb[0].mxu0 %v970
        %v972 = vpop.f32.mrb[0].mxu0
        %v973 = vadd.f32 %v871, %v972
        %v974 = vpop.f32.mrb[0].mxu0
        %975 = vmatprep.mubr.f32.mxu0 0.0
        %v976 = vand.u32 %v327, 4294901760
        %977 = vmatmul.mubr.f32.gmra.mrb[0].mxu0 %v976
        %v978 = vpop.f32.mrb[0].mxu0
        %v979 = vadd.f32 %v877, %v978
        %v980 = vpop.f32.mrb[0].mxu0
        %981 = vmatprep.mubr.f32.mxu0 0.0
        %v982 = vand.u32 %v330, 4294901760
        %983 = vmatmul.mubr.f32.gmra.mrb[0].mxu0 %v982
        %v984 = vpop.f32.mrb[0].mxu0
        %v985 = vadd.f32 %v883, %v984
        %v986 = vpop.f32.mrb[0].mxu0
        %987 = vmatprep.mubr.f32.mxu0 0.0
        %v988 = vand.u32 %v333, 4294901760
        %989 = vmatmul.mubr.f32.gmra.mrb[0].mxu0 %v988
        %v990 = vpop.f32.mrb[0].mxu0
        %v991 = vadd.f32 %v889, %v990
        %v992 = vpop.f32.mrb[0].mxu0
        %993 = vmatprep.mubr.f32.mxu0 0.0
        %v994 = vand.u32 %v336, 4294901760
        %995 = vmatmul.mubr.f32.gmra.mrb[0].mxu0 %v994
        %v996 = vpop.f32.mrb[0].mxu0
        %v997 = vadd.f32 %v895, %v996
        %v998 = vpop.f32.mrb[0].mxu0
        %999 = vmatprep.mubr.f32.mxu0 0.0
        %v1000 = vand.u32 %v339, 4294901760
        %1001 = vmatmul.mubr.f32.gmra.mrb[0].mxu0 %v1000
        %v1002 = vpop.f32.mrb[0].mxu0
        %v1003 = vadd.f32 %v901, %v1002
        %v1004 = vpop.f32.mrb[0].mxu0
        %1005 = vdwg.mxu0
        %v1006 = vand.u32 2147483647, %v973
        %vm1007 = vcmp.le.f32.partialorder %v1006, 0.7853982
        %vm1008 = vcmp.lt.s32.totalorder %v973, 0
        %v1009 = vand.u32 %v973, 2139095040
        %v1010 = vshrl.u32 %v1009, 23
        %v1011 = vsub.s32 %v1010, 127
        %v1012 = vand.u32 2147483647, %v973
        %v1013 = vand.u32 %v1012, 8388607
        %v1014 = vor.u32 %v1013, 8388608
        %v1015 = vsub.s32 0, %v1014
        %v1016 = vadd.s32 %v1011, 1
        %vm1017 = vcmp.gt.s32.totalorder %v1016, 0
        %v1018 = vsel %vm1017, %v1016, 0
        %v1019 = vshrl.u32 %v1018, 5
        %v1020 = vand.u32 %v1018, 31
        %v1021 = vsub.s32 32, %v1020
        %v1022 = vshrl.u32 683565275, %v1021
        %v1023 = vshll.u32 683565275, %v1020
        %v1024 = vshrl.u32 2475754826, %v1021
        %v1025 = vor.u32 %v1023, %v1024
        %v1026 = vshll.u32 2475754826, %v1020
        %v1027 = vshrl.u32 2131351028, %v1021
        %v1028 = vor.u32 %v1026, %v1027
        %v1029 = vshll.u32 2131351028, %v1020
        %v1030 = vshrl.u32 2102212464, %v1021
        %v1031 = vor.u32 %v1029, %v1030
        %v1032 = vshll.u32 2102212464, %v1020
        %v1033 = vshrl.u32 920167782, %v1021
        %v1034 = vor.u32 %v1032, %v1033
        %v1035 = vshll.u32 920167782, %v1020
        %v1036 = vshrl.u32 1326507024, %v1021
        %v1037 = vor.u32 %v1035, %v1036
        %vm1038 = vcmp.lt.s32.totalorder %v1019, 1
        %vm1039 = vcmp.lt.s32.totalorder %v1019, 2
        %vm1040 = vcmp.lt.s32.totalorder %v1019, 3
        %vm1041 = vcmp.lt.s32.totalorder %v1019, 4
        %v1042 = vsel %vm1038, %v1022, %v1025
        %v1043 = vsel %vm1041, %v1031, 2102212464
        %v1044 = vsel %vm1040, %v1028, %v1043
        %v1045 = vsel %vm1039, %v1042, %v1044
        %v1046 = vsel %vm1038, %v1025, %v1028
        %v1047 = vsel %vm1041, %v1034, 920167782
        %v1048 = vsel %vm1040, %v1031, %v1047
        %v1049 = vsel %vm1039, %v1046, %v1048
        %v1050 = vsel %vm1038, %v1028, %v1031
        %v1051 = vsel %vm1041, %v1037, 1326507024
        %v1052 = vsel %vm1040, %v1034, %v1051
        %v1053 = vsel %vm1039, %v1050, %v1052
        %v1054 = vshll.u32 %v1014, 8
        %v1055 = vmul.u32.u64.compose %v1054, %v1053
        %v1056 = vextract.low.u32 %v1055
        %v1057 = vextract.high.u32 %v1055
        %v1058 = vmul.u32.u64.compose %v1054, %v1049
        %v1059 = vextract.low.u32 %v1058
        %v1060 = vextract.high.u32 %v1058
        %v1061 = vmul.u32 %v1054, %v1045
        %v1062 = vadd.s32 %v1057, %v1059
        %vm1063 = vc.u32 %v1057, %v1059
        %v1064 = vadd.s32 %v1060, 1
        %v1065 = vsel %vm1063, %v1064, %v1060
        %v1066 = vadd.s32 %v1061, %v1065
        %v1067 = vadd.s32 %v1066, 536870912
        %v1068 = vshrl.u32 %v1067, 30
        %v1069 = vshll.u32 %v1068, 30
        %v1070 = vsub.s32 %v1066, %v1069
        %vm1071 = vcmp.lt.s32.totalorder %v1070, 0
        %v1072 = vsub.s32 0, %v1070
        %v1073 = vsel %vm1071, %v1072, %v1070
        %v1074 = vclz %v1073
        %v1075 = vsub.s32 %v1074, 2
        %vm1076 = vcmp.gt.s32.totalorder 0, %v1075
        %v1077 = vsel %vm1076, 0, %v1075
        %v1078 = vsub.s32 32, %v1077
        %v1079 = vshll.u32 %v1070, %v1077
        %v1080 = vshrl.u32 %v1062, %v1078
        %v1081 = vor.u32 %v1079, %v1080
        %v1082 = vsub.s32 4294967266, %v1077
        %v1083 = vadd.s32 %v1082, 127
        %v1084 = vshll.u32 %v1083, 23
        %v1085 = vor.u32 4788187, %v1084
        %v1086 = vand.u32 2147483647, %v1085
        %v1088 = vcvt.s32.f32 %v1081
        %v1089 = vmul.f32 %v1088, %v1086
        %v1090 = vxor.u32 %v1089, 2147483648
        %v1091 = vsel %vm1008, %v1090, %v1089
        %v1092 = vsub.s32 4, %v1068
        %v1093 = vsel %vm1008, %v1092, %v1068
        %v1094 = vsel %vm1007, %v973, %v1091
        %v1095 = vsel %vm1007, 0, %v1093
        %v1096 = vcosq.f32.pop %v1094
        %v1097 = vsinq.f32.pop %v1094
        %vm1098 = vweird.f32 %v973
        %v1099 = vand.u32 %v1095, 3
        %vm1100 = vcmp.lt.s32.totalorder %v1099, 2
        %vm1101 = vcmp.eq.s32.totalorder %v1099, 0
        %v1102 = vxor.u32 %v1097, 2147483648
        %v1103 = vsel %vm1101, %v1096, %v1102
        %vm1104 = vcmp.eq.s32.totalorder %v1099, 2
        %v1105 = vxor.u32 %v1096, 2147483648
        %v1106 = vsel %vm1104, %v1105, %v1097
        %v1107 = vsel %vm1100, %v1103, %v1106
        %v1108 = vsel %vm1098, nan, %v1107
        %v1109 = vand.u32 2147483647, %v979
        %vm1110 = vcmp.le.f32.partialorder %v1109, 0.7853982
        %vm1111 = vcmp.lt.s32.totalorder %v979, 0
        %v1112 = vand.u32 %v979, 2139095040
        %v1113 = vshrl.u32 %v1112, 23
        %v1114 = vsub.s32 %v1113, 127
        %v1115 = vand.u32 2147483647, %v979
        %v1116 = vand.u32 %v1115, 8388607
        %v1117 = vor.u32 %v1116, 8388608
        %v1118 = vsub.s32 0, %v1117
        %v1119 = vadd.s32 %v1114, 1
        %vm1120 = vcmp.gt.s32.totalorder %v1119, 0
        %v1121 = vsel %vm1120, %v1119, 0
        %v1122 = vshrl.u32 %v1121, 5
        %v1123 = vand.u32 %v1121, 31
        %v1124 = vsub.s32 32, %v1123
        %v1125 = vshrl.u32 683565275, %v1124
        %v1126 = vshll.u32 683565275, %v1123
        %v1127 = vshrl.u32 2475754826, %v1124
        %v1128 = vor.u32 %v1126, %v1127
        %v1129 = vshll.u32 2475754826, %v1123
        %v1130 = vshrl.u32 2131351028, %v1124
        %v1131 = vor.u32 %v1129, %v1130
        %v1132 = vshll.u32 2131351028, %v1123
        %v1133 = vshrl.u32 2102212464, %v1124
        %v1134 = vor.u32 %v1132, %v1133
        %v1135 = vshll.u32 2102212464, %v1123
        %v1136 = vshrl.u32 920167782, %v1124
        %v1137 = vor.u32 %v1135, %v1136
        %v1138 = vshll.u32 920167782, %v1123
        %v1139 = vshrl.u32 1326507024, %v1124
        %v1140 = vor.u32 %v1138, %v1139
        %vm1141 = vcmp.lt.s32.totalorder %v1122, 1
        %vm1142 = vcmp.lt.s32.totalorder %v1122, 2
        %vm1143 = vcmp.lt.s32.totalorder %v1122, 3
        %vm1144 = vcmp.lt.s32.totalorder %v1122, 4
        %v1145 = vsel %vm1141, %v1125, %v1128
        %v1146 = vsel %vm1144, %v1134, 2102212464
        %v1147 = vsel %vm1143, %v1131, %v1146
        %v1148 = vsel %vm1142, %v1145, %v1147
        %v1149 = vsel %vm1141, %v1128, %v1131
        %v1150 = vsel %vm1144, %v1137, 920167782
        %v1151 = vsel %vm1143, %v1134, %v1150
        %v1152 = vsel %vm1142, %v1149, %v1151
        %v1153 = vsel %vm1141, %v1131, %v1134
        %v1154 = vsel %vm1144, %v1140, 1326507024
        %v1155 = vsel %vm1143, %v1137, %v1154
        %v1156 = vsel %vm1142, %v1153, %v1155
        %v1157 = vshll.u32 %v1117, 8
        %v1158 = vmul.u32.u64.compose %v1157, %v1156
        %v1159 = vextract.low.u32 %v1158
        %v1160 = vextract.high.u32 %v1158
        %v1161 = vmul.u32.u64.compose %v1157, %v1152
        %v1162 = vextract.low.u32 %v1161
        %v1163 = vextract.high.u32 %v1161
        %v1164 = vmul.u32 %v1157, %v1148
        %v1165 = vadd.s32 %v1160, %v1162
        %vm1166 = vc.u32 %v1160, %v1162
        %v1167 = vadd.s32 %v1163, 1
        %v1168 = vsel %vm1166, %v1167, %v1163
        %v1169 = vadd.s32 %v1164, %v1168
        %v1170 = vadd.s32 %v1169, 536870912
        %v1171 = vshrl.u32 %v1170, 30
        %v1172 = vshll.u32 %v1171, 30
        %v1173 = vsub.s32 %v1169, %v1172
        %vm1174 = vcmp.lt.s32.totalorder %v1173, 0
        %v1175 = vsub.s32 0, %v1173
        %v1176 = vsel %vm1174, %v1175, %v1173
        %v1177 = vclz %v1176
        %v1178 = vsub.s32 %v1177, 2
        %vm1179 = vcmp.gt.s32.totalorder 0, %v1178
        %v1180 = vsel %vm1179, 0, %v1178
        %v1181 = vsub.s32 32, %v1180
        %v1182 = vshll.u32 %v1173, %v1180
        %v1183 = vshrl.u32 %v1165, %v1181
        %v1184 = vor.u32 %v1182, %v1183
        %v1185 = vsub.s32 4294967266, %v1180
        %v1186 = vadd.s32 %v1185, 127
        %v1187 = vshll.u32 %v1186, 23
        %v1188 = vor.u32 4788187, %v1187
        %v1189 = vand.u32 2147483647, %v1188
        %v1191 = vcvt.s32.f32 %v1184
        %v1192 = vmul.f32 %v1191, %v1189
        %v1193 = vxor.u32 %v1192, 2147483648
        %v1194 = vsel %vm1111, %v1193, %v1192
        %v1195 = vsub.s32 4, %v1171
        %v1196 = vsel %vm1111, %v1195, %v1171
        %v1197 = vsel %vm1110, %v979, %v1194
        %v1198 = vsel %vm1110, 0, %v1196
        %v1199 = vcosq.f32.pop %v1197
        %v1200 = vsinq.f32.pop %v1197
        %vm1201 = vweird.f32 %v979
        %v1202 = vand.u32 %v1198, 3
        %vm1203 = vcmp.lt.s32.totalorder %v1202, 2
        %vm1204 = vcmp.eq.s32.totalorder %v1202, 0
        %v1205 = vxor.u32 %v1200, 2147483648
        %v1206 = vsel %vm1204, %v1199, %v1205
        %vm1207 = vcmp.eq.s32.totalorder %v1202, 2
        %v1208 = vxor.u32 %v1199, 2147483648
        %v1209 = vsel %vm1207, %v1208, %v1200
        %v1210 = vsel %vm1203, %v1206, %v1209
        %v1211 = vsel %vm1201, nan, %v1210
        %v1212 = vand.u32 2147483647, %v985
        %vm1213 = vcmp.le.f32.partialorder %v1212, 0.7853982
        %vm1214 = vcmp.lt.s32.totalorder %v985, 0
        %v1215 = vand.u32 %v985, 2139095040
        %v1216 = vshrl.u32 %v1215, 23
        %v1217 = vsub.s32 %v1216, 127
        %v1218 = vand.u32 2147483647, %v985
        %v1219 = vand.u32 %v1218, 8388607
        %v1220 = vor.u32 %v1219, 8388608
        %v1221 = vsub.s32 0, %v1220
        %v1222 = vadd.s32 %v1217, 1
        %vm1223 = vcmp.gt.s32.totalorder %v1222, 0
        %v1224 = vsel %vm1223, %v1222, 0
        %v1225 = vshrl.u32 %v1224, 5
        %v1226 = vand.u32 %v1224, 31
        %v1227 = vsub.s32 32, %v1226
        %v1228 = vshrl.u32 683565275, %v1227
        %v1229 = vshll.u32 683565275, %v1226
        %v1230 = vshrl.u32 2475754826, %v1227
        %v1231 = vor.u32 %v1229, %v1230
        %v1232 = vshll.u32 2475754826, %v1226
        %v1233 = vshrl.u32 2131351028, %v1227
        %v1234 = vor.u32 %v1232, %v1233
        %v1235 = vshll.u32 2131351028, %v1226
        %v1236 = vshrl.u32 2102212464, %v1227
        %v1237 = vor.u32 %v1235, %v1236
        %v1238 = vshll.u32 2102212464, %v1226
        %v1239 = vshrl.u32 920167782, %v1227
        %v1240 = vor.u32 %v1238, %v1239
        %v1241 = vshll.u32 920167782, %v1226
        %v1242 = vshrl.u32 1326507024, %v1227
        %v1243 = vor.u32 %v1241, %v1242
        %vm1244 = vcmp.lt.s32.totalorder %v1225, 1
        %vm1245 = vcmp.lt.s32.totalorder %v1225, 2
        %vm1246 = vcmp.lt.s32.totalorder %v1225, 3
        %vm1247 = vcmp.lt.s32.totalorder %v1225, 4
        %v1248 = vsel %vm1244, %v1228, %v1231
        %v1249 = vsel %vm1247, %v1237, 2102212464
        %v1250 = vsel %vm1246, %v1234, %v1249
        %v1251 = vsel %vm1245, %v1248, %v1250
        %v1252 = vsel %vm1244, %v1231, %v1234
        %v1253 = vsel %vm1247, %v1240, 920167782
        %v1254 = vsel %vm1246, %v1237, %v1253
        %v1255 = vsel %vm1245, %v1252, %v1254
        %v1256 = vsel %vm1244, %v1234, %v1237
        %v1257 = vsel %vm1247, %v1243, 1326507024
        %v1258 = vsel %vm1246, %v1240, %v1257
        %v1259 = vsel %vm1245, %v1256, %v1258
        %v1260 = vshll.u32 %v1220, 8
        %v1261 = vmul.u32.u64.compose %v1260, %v1259
        %v1262 = vextract.low.u32 %v1261
        %v1263 = vextract.high.u32 %v1261
        %v1264 = vmul.u32.u64.compose %v1260, %v1255
        %v1265 = vextract.low.u32 %v1264
        %v1266 = vextract.high.u32 %v1264
        %v1267 = vmul.u32 %v1260, %v1251
        %v1268 = vadd.s32 %v1263, %v1265
        %vm1269 = vc.u32 %v1263, %v1265
        %v1270 = vadd.s32 %v1266, 1
        %v1271 = vsel %vm1269, %v1270, %v1266
        %v1272 = vadd.s32 %v1267, %v1271
        %v1273 = vadd.s32 %v1272, 536870912
        %v1274 = vshrl.u32 %v1273, 30
        %v1275 = vshll.u32 %v1274, 30
        %v1276 = vsub.s32 %v1272, %v1275
        %vm1277 = vcmp.lt.s32.totalorder %v1276, 0
        %v1278 = vsub.s32 0, %v1276
        %v1279 = vsel %vm1277, %v1278, %v1276
        %v1280 = vclz %v1279
        %v1281 = vsub.s32 %v1280, 2
        %vm1282 = vcmp.gt.s32.totalorder 0, %v1281
        %v1283 = vsel %vm1282, 0, %v1281
        %v1284 = vsub.s32 32, %v1283
        %v1285 = vshll.u32 %v1276, %v1283
        %v1286 = vshrl.u32 %v1268, %v1284
        %v1287 = vor.u32 %v1285, %v1286
        %v1288 = vsub.s32 4294967266, %v1283
        %v1289 = vadd.s32 %v1288, 127
        %v1290 = vshll.u32 %v1289, 23
        %v1291 = vor.u32 4788187, %v1290
        %v1292 = vand.u32 2147483647, %v1291
        %v1294 = vcvt.s32.f32 %v1287
        %v1295 = vmul.f32 %v1294, %v1292
        %v1296 = vxor.u32 %v1295, 2147483648
        %v1297 = vsel %vm1214, %v1296, %v1295
        %v1298 = vsub.s32 4, %v1274
        %v1299 = vsel %vm1214, %v1298, %v1274
        %v1300 = vsel %vm1213, %v985, %v1297
        %v1301 = vsel %vm1213, 0, %v1299
        %v1302 = vcosq.f32.pop %v1300
        %v1303 = vsinq.f32.pop %v1300
        %vm1304 = vweird.f32 %v985
        %v1305 = vand.u32 %v1301, 3
        %vm1306 = vcmp.lt.s32.totalorder %v1305, 2
        %vm1307 = vcmp.eq.s32.totalorder %v1305, 0
        %v1308 = vxor.u32 %v1303, 2147483648
        %v1309 = vsel %vm1307, %v1302, %v1308
        %vm1310 = vcmp.eq.s32.totalorder %v1305, 2
        %v1311 = vxor.u32 %v1302, 2147483648
        %v1312 = vsel %vm1310, %v1311, %v1303
        %v1313 = vsel %vm1306, %v1309, %v1312
        %v1314 = vsel %vm1304, nan, %v1313
        %v1315 = vand.u32 2147483647, %v991
        %vm1316 = vcmp.le.f32.partialorder %v1315, 0.7853982
        %vm1317 = vcmp.lt.s32.totalorder %v991, 0
        %v1318 = vand.u32 %v991, 2139095040
        %v1319 = vshrl.u32 %v1318, 23
        %v1320 = vsub.s32 %v1319, 127
        %v1321 = vand.u32 2147483647, %v991
        %v1322 = vand.u32 %v1321, 8388607
        %v1323 = vor.u32 %v1322, 8388608
        %v1324 = vsub.s32 0, %v1323
        %v1325 = vadd.s32 %v1320, 1
        %vm1326 = vcmp.gt.s32.totalorder %v1325, 0
        %v1327 = vsel %vm1326, %v1325, 0
        %v1328 = vshrl.u32 %v1327, 5
        %v1329 = vand.u32 %v1327, 31
        %v1330 = vsub.s32 32, %v1329
        %v1331 = vshrl.u32 683565275, %v1330
        %v1332 = vshll.u32 683565275, %v1329
        %v1333 = vshrl.u32 2475754826, %v1330
        %v1334 = vor.u32 %v1332, %v1333
        %v1335 = vshll.u32 2475754826, %v1329
        %v1336 = vshrl.u32 2131351028, %v1330
        %v1337 = vor.u32 %v1335, %v1336
        %v1338 = vshll.u32 2131351028, %v1329
        %v1339 = vshrl.u32 2102212464, %v1330
        %v1340 = vor.u32 %v1338, %v1339
        %v1341 = vshll.u32 2102212464, %v1329
        %v1342 = vshrl.u32 920167782, %v1330
        %v1343 = vor.u32 %v1341, %v1342
        %v1344 = vshll.u32 920167782, %v1329
        %v1345 = vshrl.u32 1326507024, %v1330
        %v1346 = vor.u32 %v1344, %v1345
        %vm1347 = vcmp.lt.s32.totalorder %v1328, 1
        %vm1348 = vcmp.lt.s32.totalorder %v1328, 2
        %vm1349 = vcmp.lt.s32.totalorder %v1328, 3
        %vm1350 = vcmp.lt.s32.totalorder %v1328, 4
        %v1351 = vsel %vm1347, %v1331, %v1334
        %v1352 = vsel %vm1350, %v1340, 2102212464
        %v1353 = vsel %vm1349, %v1337, %v1352
        %v1354 = vsel %vm1348, %v1351, %v1353
        %v1355 = vsel %vm1347, %v1334, %v1337
        %v1356 = vsel %vm1350, %v1343, 920167782
        %v1357 = vsel %vm1349, %v1340, %v1356
        %v1358 = vsel %vm1348, %v1355, %v1357
        %v1359 = vsel %vm1347, %v1337, %v1340
        %v1360 = vsel %vm1350, %v1346, 1326507024
        %v1361 = vsel %vm1349, %v1343, %v1360
        %v1362 = vsel %vm1348, %v1359, %v1361
        %v1363 = vshll.u32 %v1323, 8
        %v1364 = vmul.u32.u64.compose %v1363, %v1362
        %v1365 = vextract.low.u32 %v1364
        %v1366 = vextract.high.u32 %v1364
        %v1367 = vmul.u32.u64.compose %v1363, %v1358
        %v1368 = vextract.low.u32 %v1367
        %v1369 = vextract.high.u32 %v1367
        %v1370 = vmul.u32 %v1363, %v1354
        %v1371 = vadd.s32 %v1366, %v1368
        %vm1372 = vc.u32 %v1366, %v1368
        %v1373 = vadd.s32 %v1369, 1
        %v1374 = vsel %vm1372, %v1373, %v1369
        %v1375 = vadd.s32 %v1370, %v1374
        %v1376 = vadd.s32 %v1375, 536870912
        %v1377 = vshrl.u32 %v1376, 30
        %v1378 = vshll.u32 %v1377, 30
        %v1379 = vsub.s32 %v1375, %v1378
        %vm1380 = vcmp.lt.s32.totalorder %v1379, 0
        %v1381 = vsub.s32 0, %v1379
        %v1382 = vsel %vm1380, %v1381, %v1379
        %v1383 = vclz %v1382
        %v1384 = vsub.s32 %v1383, 2
        %vm1385 = vcmp.gt.s32.totalorder 0, %v1384
        %v1386 = vsel %vm1385, 0, %v1384
        %v1387 = vsub.s32 32, %v1386
        %v1388 = vshll.u32 %v1379, %v1386
        %v1389 = vshrl.u32 %v1371, %v1387
        %v1390 = vor.u32 %v1388, %v1389
        %v1391 = vsub.s32 4294967266, %v1386
        %v1392 = vadd.s32 %v1391, 127
        %v1393 = vshll.u32 %v1392, 23
        %v1394 = vor.u32 4788187, %v1393
        %v1395 = vand.u32 2147483647, %v1394
        %v1397 = vcvt.s32.f32 %v1390
        %v1398 = vmul.f32 %v1397, %v1395
        %v1399 = vxor.u32 %v1398, 2147483648
        %v1400 = vsel %vm1317, %v1399, %v1398
        %v1401 = vsub.s32 4, %v1377
        %v1402 = vsel %vm1317, %v1401, %v1377
        %v1403 = vsel %vm1316, %v991, %v1400
        %v1404 = vsel %vm1316, 0, %v1402
        %v1405 = vcosq.f32.pop %v1403
        %v1406 = vsinq.f32.pop %v1403
        %vm1407 = vweird.f32 %v991
        %v1408 = vand.u32 %v1404, 3
        %vm1409 = vcmp.lt.s32.totalorder %v1408, 2
        %vm1410 = vcmp.eq.s32.totalorder %v1408, 0
        %v1411 = vxor.u32 %v1406, 2147483648
        %v1412 = vsel %vm1410, %v1405, %v1411
        %vm1413 = vcmp.eq.s32.totalorder %v1408, 2
        %v1414 = vxor.u32 %v1405, 2147483648
        %v1415 = vsel %vm1413, %v1414, %v1406
        %v1416 = vsel %vm1409, %v1412, %v1415
        %v1417 = vsel %vm1407, nan, %v1416
        %v1418 = vand.u32 2147483647, %v997
        %vm1419 = vcmp.le.f32.partialorder %v1418, 0.7853982
        %vm1420 = vcmp.lt.s32.totalorder %v997, 0
        %v1421 = vand.u32 %v997, 2139095040
        %v1422 = vshrl.u32 %v1421, 23
        %v1423 = vsub.s32 %v1422, 127
        %v1424 = vand.u32 2147483647, %v997
        %v1425 = vand.u32 %v1424, 8388607
        %v1426 = vor.u32 %v1425, 8388608
        %v1427 = vsub.s32 0, %v1426
        %v1428 = vadd.s32 %v1423, 1
        %vm1429 = vcmp.gt.s32.totalorder %v1428, 0
        %v1430 = vsel %vm1429, %v1428, 0
        %v1431 = vshrl.u32 %v1430, 5
        %v1432 = vand.u32 %v1430, 31
        %v1433 = vsub.s32 32, %v1432
        %v1434 = vshrl.u32 683565275, %v1433
        %v1435 = vshll.u32 683565275, %v1432
        %v1436 = vshrl.u32 2475754826, %v1433
        %v1437 = vor.u32 %v1435, %v1436
        %v1438 = vshll.u32 2475754826, %v1432
        %v1439 = vshrl.u32 2131351028, %v1433
        %v1440 = vor.u32 %v1438, %v1439
        %v1441 = vshll.u32 2131351028, %v1432
        %v1442 = vshrl.u32 2102212464, %v1433
        %v1443 = vor.u32 %v1441, %v1442
        %v1444 = vshll.u32 2102212464, %v1432
        %v1445 = vshrl.u32 920167782, %v1433
        %v1446 = vor.u32 %v1444, %v1445
        %v1447 = vshll.u32 920167782, %v1432
        %v1448 = vshrl.u32 1326507024, %v1433
        %v1449 = vor.u32 %v1447, %v1448
        %vm1450 = vcmp.lt.s32.totalorder %v1431, 1
        %vm1451 = vcmp.lt.s32.totalorder %v1431, 2
        %vm1452 = vcmp.lt.s32.totalorder %v1431, 3
        %vm1453 = vcmp.lt.s32.totalorder %v1431, 4
        %v1454 = vsel %vm1450, %v1434, %v1437
        %v1455 = vsel %vm1453, %v1443, 2102212464
        %v1456 = vsel %vm1452, %v1440, %v1455
        %v1457 = vsel %vm1451, %v1454, %v1456
        %v1458 = vsel %vm1450, %v1437, %v1440
        %v1459 = vsel %vm1453, %v1446, 920167782
        %v1460 = vsel %vm1452, %v1443, %v1459
        %v1461 = vsel %vm1451, %v1458, %v1460
        %v1462 = vsel %vm1450, %v1440, %v1443
        %v1463 = vsel %vm1453, %v1449, 1326507024
        %v1464 = vsel %vm1452, %v1446, %v1463
        %v1465 = vsel %vm1451, %v1462, %v1464
        %v1466 = vshll.u32 %v1426, 8
        %v1467 = vmul.u32.u64.compose %v1466, %v1465
        %v1468 = vextract.low.u32 %v1467
        %v1469 = vextract.high.u32 %v1467
        %v1470 = vmul.u32.u64.compose %v1466, %v1461
        %v1471 = vextract.low.u32 %v1470
        %v1472 = vextract.high.u32 %v1470
        %v1473 = vmul.u32 %v1466, %v1457
        %v1474 = vadd.s32 %v1469, %v1471
        %vm1475 = vc.u32 %v1469, %v1471
        %v1476 = vadd.s32 %v1472, 1
        %v1477 = vsel %vm1475, %v1476, %v1472
        %v1478 = vadd.s32 %v1473, %v1477
        %v1479 = vadd.s32 %v1478, 536870912
        %v1480 = vshrl.u32 %v1479, 30
        %v1481 = vshll.u32 %v1480, 30
        %v1482 = vsub.s32 %v1478, %v1481
        %vm1483 = vcmp.lt.s32.totalorder %v1482, 0
        %v1484 = vsub.s32 0, %v1482
        %v1485 = vsel %vm1483, %v1484, %v1482
        %v1486 = vclz %v1485
        %v1487 = vsub.s32 %v1486, 2
        %vm1488 = vcmp.gt.s32.totalorder 0, %v1487
        %v1489 = vsel %vm1488, 0, %v1487
        %v1490 = vsub.s32 32, %v1489
        %v1491 = vshll.u32 %v1482, %v1489
        %v1492 = vshrl.u32 %v1474, %v1490
        %v1493 = vor.u32 %v1491, %v1492
        %v1494 = vsub.s32 4294967266, %v1489
        %v1495 = vadd.s32 %v1494, 127
        %v1496 = vshll.u32 %v1495, 23
        %v1497 = vor.u32 4788187, %v1496
        %v1498 = vand.u32 2147483647, %v1497
        %v1500 = vcvt.s32.f32 %v1493
        %v1501 = vmul.f32 %v1500, %v1498
        %v1502 = vxor.u32 %v1501, 2147483648
        %v1503 = vsel %vm1420, %v1502, %v1501
        %v1504 = vsub.s32 4, %v1480
        %v1505 = vsel %vm1420, %v1504, %v1480
        %v1506 = vsel %vm1419, %v997, %v1503
        %v1507 = vsel %vm1419, 0, %v1505
        %v1508 = vcosq.f32.pop %v1506
        %v1509 = vsinq.f32.pop %v1506
        %vm1510 = vweird.f32 %v997
        %v1511 = vand.u32 %v1507, 3
        %vm1512 = vcmp.lt.s32.totalorder %v1511, 2
        %vm1513 = vcmp.eq.s32.totalorder %v1511, 0
        %v1514 = vxor.u32 %v1509, 2147483648
        %v1515 = vsel %vm1513, %v1508, %v1514
        %vm1516 = vcmp.eq.s32.totalorder %v1511, 2
        %v1517 = vxor.u32 %v1508, 2147483648
        %v1518 = vsel %vm1516, %v1517, %v1509
        %v1519 = vsel %vm1512, %v1515, %v1518
        %v1520 = vsel %vm1510, nan, %v1519
        %v1521 = vand.u32 2147483647, %v1003
        %vm1522 = vcmp.le.f32.partialorder %v1521, 0.7853982
        %vm1523 = vcmp.lt.s32.totalorder %v1003, 0
        %v1524 = vand.u32 %v1003, 2139095040
        %v1525 = vshrl.u32 %v1524, 23
        %v1526 = vsub.s32 %v1525, 127
        %v1527 = vand.u32 2147483647, %v1003
        %v1528 = vand.u32 %v1527, 8388607
        %v1529 = vor.u32 %v1528, 8388608
        %v1530 = vsub.s32 0, %v1529
        %v1531 = vadd.s32 %v1526, 1
        %vm1532 = vcmp.gt.s32.totalorder %v1531, 0
        %v1533 = vsel %vm1532, %v1531, 0
        %v1534 = vshrl.u32 %v1533, 5
        %v1535 = vand.u32 %v1533, 31
        %v1536 = vsub.s32 32, %v1535
        %v1537 = vshrl.u32 683565275, %v1536
        %v1538 = vshll.u32 683565275, %v1535
        %v1539 = vshrl.u32 2475754826, %v1536
        %v1540 = vor.u32 %v1538, %v1539
        %v1541 = vshll.u32 2475754826, %v1535
        %v1542 = vshrl.u32 2131351028, %v1536
        %v1543 = vor.u32 %v1541, %v1542
        %v1544 = vshll.u32 2131351028, %v1535
        %v1545 = vshrl.u32 2102212464, %v1536
        %v1546 = vor.u32 %v1544, %v1545
        %v1547 = vshll.u32 2102212464, %v1535
        %v1548 = vshrl.u32 920167782, %v1536
        %v1549 = vor.u32 %v1547, %v1548
        %v1550 = vshll.u32 920167782, %v1535
        %v1551 = vshrl.u32 1326507024, %v1536
        %v1552 = vor.u32 %v1550, %v1551
        %vm1553 = vcmp.lt.s32.totalorder %v1534, 1
        %vm1554 = vcmp.lt.s32.totalorder %v1534, 2
        %vm1555 = vcmp.lt.s32.totalorder %v1534, 3
        %vm1556 = vcmp.lt.s32.totalorder %v1534, 4
        %v1557 = vsel %vm1553, %v1537, %v1540
        %v1558 = vsel %vm1556, %v1546, 2102212464
        %v1559 = vsel %vm1555, %v1543, %v1558
        %v1560 = vsel %vm1554, %v1557, %v1559
        %v1561 = vsel %vm1553, %v1540, %v1543
        %v1562 = vsel %vm1556, %v1549, 920167782
        %v1563 = vsel %vm1555, %v1546, %v1562
        %v1564 = vsel %vm1554, %v1561, %v1563
        %v1565 = vsel %vm1553, %v1543, %v1546
        %v1566 = vsel %vm1556, %v1552, 1326507024
        %v1567 = vsel %vm1555, %v1549, %v1566
        %v1568 = vsel %vm1554, %v1565, %v1567
        %v1569 = vshll.u32 %v1529, 8
        %v1570 = vmul.u32.u64.compose %v1569, %v1568
        %v1571 = vextract.low.u32 %v1570
        %v1572 = vextract.high.u32 %v1570
        %v1573 = vmul.u32.u64.compose %v1569, %v1564
        %v1574 = vextract.low.u32 %v1573
        %v1575 = vextract.high.u32 %v1573
        %v1576 = vmul.u32 %v1569, %v1560
        %v1577 = vadd.s32 %v1572, %v1574
        %vm1578 = vc.u32 %v1572, %v1574
        %v1579 = vadd.s32 %v1575, 1
        %v1580 = vsel %vm1578, %v1579, %v1575
        %v1581 = vadd.s32 %v1576, %v1580
        %v1582 = vadd.s32 %v1581, 536870912
        %v1583 = vshrl.u32 %v1582, 30
        %v1584 = vshll.u32 %v1583, 30
        %v1585 = vsub.s32 %v1581, %v1584
        %vm1586 = vcmp.lt.s32.totalorder %v1585, 0
        %v1587 = vsub.s32 0, %v1585
        %v1588 = vsel %vm1586, %v1587, %v1585
        %v1589 = vclz %v1588
        %v1590 = vsub.s32 %v1589, 2
        %vm1591 = vcmp.gt.s32.totalorder 0, %v1590
        %v1592 = vsel %vm1591, 0, %v1590
        %v1593 = vsub.s32 32, %v1592
        %v1594 = vshll.u32 %v1585, %v1592
        %v1595 = vshrl.u32 %v1577, %v1593
        %v1596 = vor.u32 %v1594, %v1595
        %v1597 = vsub.s32 4294967266, %v1592
        %v1598 = vadd.s32 %v1597, 127
        %v1599 = vshll.u32 %v1598, 23
        %v1600 = vor.u32 4788187, %v1599
        %v1601 = vand.u32 2147483647, %v1600
        %v1603 = vcvt.s32.f32 %v1596
        %v1604 = vmul.f32 %v1603, %v1601
        %v1605 = vxor.u32 %v1604, 2147483648
        %v1606 = vsel %vm1523, %v1605, %v1604
        %v1607 = vsub.s32 4, %v1583
        %v1608 = vsel %vm1523, %v1607, %v1583
        %v1609 = vsel %vm1522, %v1003, %v1606
        %v1610 = vsel %vm1522, 0, %v1608
        %v1611 = vcosq.f32.pop %v1609
        %v1612 = vsinq.f32.pop %v1609
        %vm1613 = vweird.f32 %v1003
        %v1614 = vand.u32 %v1610, 3
        %vm1615 = vcmp.lt.s32.totalorder %v1614, 2
        %vm1616 = vcmp.eq.s32.totalorder %v1614, 0
        %v1617 = vxor.u32 %v1612, 2147483648
        %v1618 = vsel %vm1616, %v1611, %v1617
        %vm1619 = vcmp.eq.s32.totalorder %v1614, 2
        %v1620 = vxor.u32 %v1611, 2147483648
        %v1621 = vsel %vm1619, %v1620, %v1612
        %v1622 = vsel %vm1615, %v1618, %v1621
        %v1623 = vsel %vm1613, nan, %v1622
        %v1624 = vld [vmem:[%s304] sm:$0xff]
        %v1625 = vld [vmem:[%s304 + $0x8] sm:$0xff]
        %v1626 = vld [vmem:[%s304 + $0x10] sm:$0xff]
        %v1627 = vld [vmem:[%s304 + $0x18] sm:$0xff]
        %v1628 = vld [vmem:[%s304 + $0x20] sm:$0xff]
        %v1629 = vld [vmem:[%s304 + $0x28] sm:$0xff]
        %v1630 = vld [vmem:[%s3] sm:$0xff]
        %v1631 = vld [vmem:[%s3 + $0x8] sm:$0xff]
        %v1632 = vld [vmem:[%s3 + $0x10] sm:$0xff]
        %v1633 = vld [vmem:[%s3 + $0x18] sm:$0xff]
        %v1634 = vld [vmem:[%s3 + $0x20] sm:$0xff]
        %v1635 = vld [vmem:[%s3 + $0x28] sm:$0xff]
        %v1636 = vld [vmem:[%s3 + $0x30] sm:$0xff]
        %v1637 = vld [vmem:[%s3 + $0x38] sm:$0xff]
        %v1638 = vld [vmem:[%s3 + $0x40] sm:$0xff]
        %v1639 = vld [vmem:[%s3 + $0x48] sm:$0xff]
        %v1640 = vld [vmem:[%s3 + $0x50] sm:$0xff]
        %v1641 = vld [vmem:[%s3 + $0x58] sm:$0xff]
        %v1642 = vld [vmem:[%s3 + $0x60] sm:$0xff]
        %v1643 = vld [vmem:[%s3 + $0x68] sm:$0xff]
        %v1644 = vld [vmem:[%s3 + $0x70] sm:$0xff]
        %v1645 = vld [vmem:[%s3 + $0x78] sm:$0xff]
        %v1646 = vld [vmem:[%s4] sm:$0xff]
        %v1647 = vld [vmem:[%s4 + $0x8] sm:$0xff]
        %v1648 = vld [vmem:[%s4 + $0x10] sm:$0xff]
        %v1649 = vld [vmem:[%s4 + $0x18] sm:$0xff]
        %v1650 = vld [vmem:[%s4 + $0x20] sm:$0xff]
        %v1651 = vld [vmem:[%s4 + $0x28] sm:$0xff]
        %v1652 = vld [vmem:[%s4 + $0x30] sm:$0xff]
        %v1653 = vld [vmem:[%s4 + $0x38] sm:$0xff]
        %v1654 = vld [vmem:[%s4 + $0x40] sm:$0xff]
        %v1655 = vld [vmem:[%s4 + $0x48] sm:$0xff]
        %v1656 = vld [vmem:[%s4 + $0x50] sm:$0xff]
        %v1657 = vld [vmem:[%s4 + $0x58] sm:$0xff]
        %v1658 = vld [vmem:[%s4 + $0x60] sm:$0xff]
        %v1659 = vld [vmem:[%s4 + $0x68] sm:$0xff]
        %v1660 = vld [vmem:[%s4 + $0x70] sm:$0xff]
        %v1661 = vld [vmem:[%s4 + $0x78] sm:$0xff]
        %1662 = vmatprep.subr.mxu0 0.0
        %1663 = vmatpush1.msra.mxu0 %v1646
        %1664 = vmatprep.subr.mxu0 0.0
        %1665 = vmatpush1.msra.mxu0 %v1647
        %1666 = vmatprep.subr.mxu0 0.0
        %1667 = vmatpush1.msra.mxu0 %v1648
        %1668 = vmatprep.subr.mxu0 0.0
        %1669 = vmatpush1.msra.mxu0 %v1649
        %1670 = vmatprep.subr.mxu0 0.0
        %1671 = vmatpush1.msra.mxu0 %v1650
        %1672 = vmatprep.subr.mxu0 0.0
        %1673 = vmatpush1.msra.mxu0 %v1651
        %1674 = vmatprep.subr.mxu0 0.0
        %1675 = vmatpush1.msra.mxu0 %v1652
        %1676 = vmatprep.subr.mxu0 0.0
        %1677 = vmatpush1.msra.mxu0 %v1653
        %1678 = vmatprep.subr.mxu0 0.0
        %1679 = vmatpush1.msra.mxu0 %v1654
        %1680 = vmatprep.subr.mxu0 0.0
        %1681 = vmatpush1.msra.mxu0 %v1655
        %1682 = vmatprep.subr.mxu0 0.0
        %1683 = vmatpush1.msra.mxu0 %v1656
        %1684 = vmatprep.subr.mxu0 0.0
        %1685 = vmatpush1.msra.mxu0 %v1657
        %1686 = vmatprep.subr.mxu0 0.0
        %1687 = vmatpush1.msra.mxu0 %v1658
        %1688 = vmatprep.subr.mxu0 0.0
        %1689 = vmatpush1.msra.mxu0 %v1659
        %1690 = vmatprep.subr.mxu0 0.0
        %1691 = vmatpush1.msra.mxu0 %v1660
        %1692 = vmatprep.subr.mxu0 0.0
        %1693 = vmatpush1.msra.mxu0 %v1661
        %1694 = vmatprep.subr.mxu0 0.0
        %1695 = vmatpush1.msra.mxu0 0.0
        %1696 = vmatprep.subr.mxu0 0.0
        %1697 = vmatpush1.msra.mxu0 0.0
        %1698 = vmatprep.subr.mxu0 0.0
        %1699 = vmatpush1.msra.mxu0 0.0
        %1700 = vmatprep.subr.mxu0 0.0
        %1701 = vmatpush1.msra.mxu0 0.0
        %1702 = vmatprep.subr.mxu0 0.0
        %1703 = vmatpush1.msra.mxu0 0.0
        %1704 = vmatprep.subr.mxu0 0.0
        %1705 = vmatpush1.msra.mxu0 0.0
        %1706 = vmatprep.subr.mxu0 0.0
        %1707 = vmatpush1.msra.mxu0 0.0
        %1708 = vmatprep.subr.mxu0 0.0
        %1709 = vmatpush1.msra.mxu0 0.0
        %1710 = vmatprep.subr.mxu0 0.0
        %1711 = vmatpush1.msra.mxu0 0.0
        %1712 = vmatprep.subr.mxu0 0.0
        %1713 = vmatpush1.msra.mxu0 0.0
        %1714 = vmatprep.subr.mxu0 0.0
        %1715 = vmatpush1.msra.mxu0 0.0
        %1716 = vmatprep.subr.mxu0 0.0
        %1717 = vmatpush1.msra.mxu0 0.0
        %1718 = vmatprep.subr.mxu0 0.0
        %1719 = vmatpush1.msra.mxu0 0.0
        %1720 = vmatprep.subr.mxu0 0.0
        %1721 = vmatpush1.msra.mxu0 0.0
        %1722 = vmatprep.subr.mxu0 0.0
        %1723 = vmatpush1.msra.mxu0 0.0
        %1724 = vmatprep.subr.mxu0 0.0
        %1725 = vmatpush1.msra.mxu0 0.0
        %1726 = vmatprep.mubr.f32.mxu0 0.0
        %1727 = vmatmul.mubr.f32.gmra.mrb[0].mxu0 %v1108
        %v1728 = vpop.f32.mrb[0].mxu0
        %v1729 = vadd.f32 0.0, %v1728
        %v1730 = vpop.f32.mrb[0].mxu0
        %1731 = vmatprep.mubr.f32.mxu0 0.0
        %1732 = vmatmul.mubr.f32.gmra.mrb[0].mxu0 %v1211
        %v1733 = vpop.f32.mrb[0].mxu0
        %v1734 = vadd.f32 0.0, %v1733
        %v1735 = vpop.f32.mrb[0].mxu0
        %1736 = vmatprep.mubr.f32.mxu0 0.0
        %1737 = vmatmul.mubr.f32.gmra.mrb[0].mxu0 %v1314
        %v1738 = vpop.f32.mrb[0].mxu0
        %v1739 = vadd.f32 0.0, %v1738
        %v1740 = vpop.f32.mrb[0].mxu0
        %1741 = vmatprep.mubr.f32.mxu0 0.0
        %1742 = vmatmul.mubr.f32.gmra.mrb[0].mxu0 %v1417
        %v1743 = vpop.f32.mrb[0].mxu0
        %v1744 = vadd.f32 0.0, %v1743
        %v1745 = vpop.f32.mrb[0].mxu0
        %1746 = vmatprep.mubr.f32.mxu0 0.0
        %1747 = vmatmul.mubr.f32.gmra.mrb[0].mxu0 %v1520
        %v1748 = vpop.f32.mrb[0].mxu0
        %v1749 = vadd.f32 0.0, %v1748
        %v1750 = vpop.f32.mrb[0].mxu0
        %1751 = vmatprep.mubr.f32.mxu0 0.0
        %1752 = vmatmul.mubr.f32.gmra.mrb[0].mxu0 %v1623
        %v1753 = vpop.f32.mrb[0].mxu0
        %v1754 = vadd.f32 0.0, %v1753
        %v1755 = vpop.f32.mrb[0].mxu0
        %1756 = vdwg.mxu0
        %1757 = vmatprep.subr.mxu0 0.0
        %1758 = vmatpush1.msra.mxu0 %v1630
        %1759 = vmatprep.subr.mxu0 0.0
        %1760 = vmatpush1.msra.mxu0 %v1631
        %1761 = vmatprep.subr.mxu0 0.0
        %1762 = vmatpush1.msra.mxu0 %v1632
        %1763 = vmatprep.subr.mxu0 0.0
        %1764 = vmatpush1.msra.mxu0 %v1633
        %1765 = vmatprep.subr.mxu0 0.0
        %1766 = vmatpush1.msra.mxu0 %v1634
        %1767 = vmatprep.subr.mxu0 0.0
        %1768 = vmatpush1.msra.mxu0 %v1635
        %1769 = vmatprep.subr.mxu0 0.0
        %1770 = vmatpush1.msra.mxu0 %v1636
        %1771 = vmatprep.subr.mxu0 0.0
        %1772 = vmatpush1.msra.mxu0 %v1637
        %1773 = vmatprep.subr.mxu0 0.0
        %1774 = vmatpush1.msra.mxu0 %v1638
        %1775 = vmatprep.subr.mxu0 0.0
        %1776 = vmatpush1.msra.mxu0 %v1639
        %1777 = vmatprep.subr.mxu0 0.0
        %1778 = vmatpush1.msra.mxu0 %v1640
        %1779 = vmatprep.subr.mxu0 0.0
        %1780 = vmatpush1.msra.mxu0 %v1641
        %1781 = vmatprep.subr.mxu0 0.0
        %1782 = vmatpush1.msra.mxu0 %v1642
        %1783 = vmatprep.subr.mxu0 0.0
        %1784 = vmatpush1.msra.mxu0 %v1643
        %1785 = vmatprep.subr.mxu0 0.0
        %1786 = vmatpush1.msra.mxu0 %v1644
        %1787 = vmatprep.subr.mxu0 0.0
        %1788 = vmatpush1.msra.mxu0 %v1645
        %1789 = vmatprep.subr.mxu0 0.0
        %1790 = vmatpush1.msra.mxu0 0.0
        %1791 = vmatprep.subr.mxu0 0.0
        %1792 = vmatpush1.msra.mxu0 0.0
        %1793 = vmatprep.subr.mxu0 0.0
        %1794 = vmatpush1.msra.mxu0 0.0
        %1795 = vmatprep.subr.mxu0 0.0
        %1796 = vmatpush1.msra.mxu0 0.0
        %1797 = vmatprep.subr.mxu0 0.0
        %1798 = vmatpush1.msra.mxu0 0.0
        %1799 = vmatprep.subr.mxu0 0.0
        %1800 = vmatpush1.msra.mxu0 0.0
        %1801 = vmatprep.subr.mxu0 0.0
        %1802 = vmatpush1.msra.mxu0 0.0
        %1803 = vmatprep.subr.mxu0 0.0
        %1804 = vmatpush1.msra.mxu0 0.0
        %1805 = vmatprep.subr.mxu0 0.0
        %1806 = vmatpush1.msra.mxu0 0.0
        %1807 = vmatprep.subr.mxu0 0.0
        %1808 = vmatpush1.msra.mxu0 0.0
        %1809 = vmatprep.subr.mxu0 0.0
        %1810 = vmatpush1.msra.mxu0 0.0
        %1811 = vmatprep.subr.mxu0 0.0
        %1812 = vmatpush1.msra.mxu0 0.0
        %1813 = vmatprep.subr.mxu0 0.0
        %1814 = vmatpush1.msra.mxu0 0.0
        %1815 = vmatprep.subr.mxu0 0.0
        %1816 = vmatpush1.msra.mxu0 0.0
        %1817 = vmatprep.subr.mxu0 0.0
        %1818 = vmatpush1.msra.mxu0 0.0
        %1819 = vmatprep.subr.mxu0 0.0
        %1820 = vmatpush1.msra.mxu0 0.0
        %1821 = vmatprep.mubr.f32.mxu0 0.0
        %1822 = vmatmul.mubr.f32.gmra.mrb[0].mxu0 %v1624
        %v1823 = vpop.f32.mrb[0].mxu0
        %v1824 = vadd.f32 %v1729, %v1823
        %v1825 = vpop.f32.mrb[0].mxu0
        %1826 = vmatprep.mubr.f32.mxu0 0.0
        %1827 = vmatmul.mubr.f32.gmra.mrb[0].mxu0 %v1625
        %v1828 = vpop.f32.mrb[0].mxu0
        %v1829 = vadd.f32 %v1734, %v1828
        %v1830 = vpop.f32.mrb[0].mxu0
        %1831 = vmatprep.mubr.f32.mxu0 0.0
        %1832 = vmatmul.mubr.f32.gmra.mrb[0].mxu0 %v1626
        %v1833 = vpop.f32.mrb[0].mxu0
        %v1834 = vadd.f32 %v1739, %v1833
        %v1835 = vpop.f32.mrb[0].mxu0
        %1836 = vmatprep.mubr.f32.mxu0 0.0
        %1837 = vmatmul.mubr.f32.gmra.mrb[0].mxu0 %v1627
        %v1838 = vpop.f32.mrb[0].mxu0
        %v1839 = vadd.f32 %v1744, %v1838
        %v1840 = vpop.f32.mrb[0].mxu0
        %1841 = vmatprep.mubr.f32.mxu0 0.0
        %1842 = vmatmul.mubr.f32.gmra.mrb[0].mxu0 %v1628
        %v1843 = vpop.f32.mrb[0].mxu0
        %v1844 = vadd.f32 %v1749, %v1843
        %v1845 = vpop.f32.mrb[0].mxu0
        %1846 = vmatprep.mubr.f32.mxu0 0.0
        %1847 = vmatmul.mubr.f32.gmra.mrb[0].mxu0 %v1629
        %v1848 = vpop.f32.mrb[0].mxu0
        %v1849 = vadd.f32 %v1754, %v1848
        %v1850 = vpop.f32.mrb[0].mxu0
        %1851 = vdwg.mxu0
        %v1852 = vld [vmem:[%s5] sm:$0x1]
        %v1854 = vlaneseq
        %v1855 = vshrl.u32 %v1854, 7
        %v1856 = vsub.s32 0, %v1855
        %v1857 = vrot.slane %v1852, %v1856
        %v1859 = vadd.f32 %v1824, %v1857
        %v1860 = vadd.f32 %v1829, %v1857
        %v1861 = vadd.f32 %v1834, %v1857
        %v1862 = vadd.f32 %v1839, %v1857
        %v1863 = vadd.f32 %v1844, %v1857
        %v1864 = vadd.f32 %v1849, %v1857
        %1865 = vst [vmem:[%s281] sm:$0xff] %v1859
        %1866 = vst [vmem:[%s281 + $0x8] sm:$0xff] %v1860
        %1867 = vst [vmem:[%s281 + $0x10] sm:$0xff] %v1861
        %1868 = vst [vmem:[%s281 + $0x18] sm:$0xff] %v1862
        %1869 = vst [vmem:[%s281 + $0x20] sm:$0xff] %v1863
        %1870 = vst [vmem:[%s281 + $0x28] sm:$0xff] %v1864
        %s1871 = sand.u32 %s161, 1
        %s1872 = sand.u32 %s161, 1
        %s1873 = smul.addr %s1872, 48
        %s1874 = scalar_lea.vmem [#allocation2], %s1873
        // Predicated region
        $region45: #{feat_encode.1} parent=43 // pred_check
          %p1875 = pneg %p171
        $region46: #{feat_encode.1} parent=43 // pred_check_branch
          %1877 = sbr.rel (%p1875) target = $region48
        $region47: #{feat_encode.1} parent=43 // pred_region
          %s1878 = smul.u32 6, %s17
          %s1879 = ssub.s32 10, %s1878
          %p1880 = scmp.lt.s32.totalorder %s1879, 6
          %s1881 = scalar_select %p1880, %s1879, 6
          %s1882 = smul.u32 128, %s1881
          %p1883 = scmp.ne.s32.totalorder 0, %s1882
          %s1884 = smul.addr %s1878, 8
          %s1885 = scalar_lea.vmem %s6, %s1884
          // Predicated region
          $region49: #{feat_encode.1} parent=47 // pred_check
            %p1886 = pneg %p1883
          $region50: #{feat_encode.1} parent=47 // pred_check_branch
            %1888 = sbr.rel (%p1886) target = $region52
          $region51: #{feat_encode.1} parent=47 // pred_region
            // Predicated region
            $region53: #{feat_encode.1} parent=51 // pred_check
              _
            $region54: #{feat_encode.1} parent=51 // pred_check_branch
              %1890 = sbr.rel (0) target = $region56
            $region55: #{feat_encode.1} parent=51 // pred_region
              // Predicated region
              $region75: #{feat_encode.1} parent=55 // pred_check
                _
              $region76: #{feat_encode.1} parent=55 // pred_check_branch
                %1950 = sbr.rel (0) target = $region78
              $region77: #{feat_encode.1} parent=55 // pred_region
                %s1951 = sdiv.u32.pop %s1881, 6
                %s1952 = srem.u32.pop %s1881, 6
                // While loop
                $region79: #{feat_encode.1} parent=77 // loop_pre_header
                  _
                $region80: #{feat_encode.1} parent=77 // loop_header
                  %s1954 = sphi 0, %s1956
                  %p1955 = scmp.ge.s32.totalorder %s1954, %s1951
                  %s1959 = sphi 0, %s1976
                  %s1960 = sphi %s1874, %s1979
                  %s1961 = sphi %s1885, %s1980
                $region81: #{feat_encode.1} parent=77 // loop_header_branch
                  %1958 = sbr.rel (%p1955) target = $region85
                $region82: #{feat_encode.1} parent=77 // loop_body
                  %v1962 = vld [vmem:[%s1960] sm:$0xff]
                  %1963 = vst [vmem:[%s1961] sm:$0xff] %v1962
                  %v1964 = vld [vmem:[%s1960 + $0x8] sm:$0xff]
                  %1965 = vst [vmem:[%s1961 + $0x8] sm:$0xff] %v1964
                  %v1966 = vld [vmem:[%s1960 + $0x10] sm:$0xff]
                  %1967 = vst [vmem:[%s1961 + $0x10] sm:$0xff] %v1966
                  %v1968 = vld [vmem:[%s1960 + $0x18] sm:$0xff]
                  %1969 = vst [vmem:[%s1961 + $0x18] sm:$0xff] %v1968
                  %v1970 = vld [vmem:[%s1960 + $0x20] sm:$0xff]
                  %1971 = vst [vmem:[%s1961 + $0x20] sm:$0xff] %v1970
                  %v1972 = vld [vmem:[%s1960 + $0x28] sm:$0xff]
                  %1973 = vst [vmem:[%s1961 + $0x28] sm:$0xff] %v1972
                  %s1974 = sadd.s32 1, %s1959
                  %p1975 = scmp.ge.s32.totalorder %s1974, %s1951
                  %s1976 = scalar_select %p1975, 0, %s1974
                  %s1977 = smul.u32 %s1976, 48
                  %s1978 = smul.u32 %s1976, 48
                  %s1979 = scalar_lea.vmem %s1874, %s1977 [#allocation2]
                  %s1980 = scalar_lea.vmem %s1885, %s1978
                $region83: #{feat_encode.1} parent=77 // loop_footer
                  %s1956 = sadd.s32 %s1954, 1
                $region84: #{feat_encode.1} parent=77 // loop_footer_branch
                  %1953 = sbr.rel target = $region80
                $region85: #{feat_encode.1} parent=77 // loop_exit
                  _
                %s1981 = sdiv.u32.pop %s1881, 6
                %s1982 = srem.u32.pop %s1881, 6
                %s1983 = smul.u32 %s1981, 6
                %s1984 = smul.u32 8, %s1983
                %s1985 = scalar_lea.vmem %s1874, %s1984 [#allocation2]
                %s1986 = smul.u32 8, %s1983
                %s1987 = scalar_lea.vmem %s1885, %s1986
                // While loop
                $region86: #{feat_encode.1} parent=77 // loop_pre_header
                  _
                $region87: #{feat_encode.1} parent=77 // loop_header
                  %s1989 = sphi 0, %s1991
                  %p1990 = scmp.ge.s32.totalorder %s1989, %s1982
                  %s1994 = sphi 0, %s2001
                  %s1995 = sphi %s1985, %s2004
                  %s1996 = sphi %s1987, %s2005
                $region88: #{feat_encode.1} parent=77 // loop_header_branch
                  %1993 = sbr.rel (%p1990) target = $region92
                $region89: #{feat_encode.1} parent=77 // loop_body
                  %v1997 = vld [vmem:[%s1995] sm:$0xff]
                  %1998 = vst [vmem:[%s1996] sm:$0xff] %v1997
                  %s1999 = sadd.s32 1, %s1994
                  %p2000 = scmp.ge.s32.totalorder %s1999, %s1982
                  %s2001 = scalar_select %p2000, 0, %s1999
                  %s2002 = smul.u32 %s2001, 8
                  %s2003 = smul.u32 %s2001, 8
                  %s2004 = scalar_lea.vmem %s1985, %s2002 [#allocation2]
                  %s2005 = scalar_lea.vmem %s1987, %s2003
                $region90: #{feat_encode.1} parent=77 // loop_footer
                  %s1991 = sadd.s32 %s1989, 1
                $region91: #{feat_encode.1} parent=77 // loop_footer_branch
                  %1988 = sbr.rel target = $region87
                $region92: #{feat_encode.1} parent=77 // loop_exit
                  _
              $region78: #{feat_encode.1} parent=55 // pred_fallthru
                _
              // Predicated region
              $region93: #{feat_encode.1} parent=55 // pred_check
                _
              $region94: #{feat_encode.1} parent=55 // pred_check_branch
                %2007 = sbr.rel target = $region96
              $region95: #{feat_encode.1} parent=55 // pred_region
                _
              $region96: #{feat_encode.1} parent=55 // pred_fallthru
                _
            $region56: #{feat_encode.1} parent=51 // pred_fallthru
              _
            // Predicated region
            $region57: #{feat_encode.1} parent=51 // pred_check
              _
            $region58: #{feat_encode.1} parent=51 // pred_check_branch
              %1892 = sbr.rel target = $region60
            $region59: #{feat_encode.1} parent=51 // pred_region
              %s1894 = sdiv.u32.pop %s1881, 6
              %s1895 = srem.u32.pop %s1881, 6
              // While loop
              $region61: #{feat_encode.1} parent=59 // loop_pre_header
                _
              $region62: #{feat_encode.1} parent=59 // loop_header
                %s1897 = sphi 0, %s1899
                %p1898 = scmp.ge.s32.totalorder %s1897, %s1894
                %s1902 = sphi 0, %s1919
                %s1903 = sphi %s1874, %s1922
                %s1904 = sphi %s1885, %s1923
              $region63: #{feat_encode.1} parent=59 // loop_header_branch
                %1901 = sbr.rel (%p1898) target = $region67
              $region64: #{feat_encode.1} parent=59 // loop_body
                %v1905 = vld [vmem:[%s1903] sm:$0xff]
                %1906 = vst [vmem:[%s1904] sm:$0xff] %v1905
                %v1907 = vld [vmem:[%s1903 + $0x8] sm:$0xff]
                %1908 = vst [vmem:[%s1904 + $0x8] sm:$0xff] %v1907
                %v1909 = vld [vmem:[%s1903 + $0x10] sm:$0xff]
                %1910 = vst [vmem:[%s1904 + $0x10] sm:$0xff] %v1909
                %v1911 = vld [vmem:[%s1903 + $0x18] sm:$0xff]
                %1912 = vst [vmem:[%s1904 + $0x18] sm:$0xff] %v1911
                %v1913 = vld [vmem:[%s1903 + $0x20] sm:$0xff]
                %1914 = vst [vmem:[%s1904 + $0x20] sm:$0xff] %v1913
                %v1915 = vld [vmem:[%s1903 + $0x28] sm:$0xff]
                %1916 = vst [vmem:[%s1904 + $0x28] sm:$0xff] %v1915
                %s1917 = sadd.s32 1, %s1902
                %p1918 = scmp.ge.s32.totalorder %s1917, %s1894
                %s1919 = scalar_select %p1918, 0, %s1917
                %s1920 = smul.u32 %s1919, 48
                %s1921 = smul.u32 %s1919, 48
                %s1922 = scalar_lea.vmem %s1874, %s1920 [#allocation2]
                %s1923 = scalar_lea.vmem %s1885, %s1921
              $region65: #{feat_encode.1} parent=59 // loop_footer
                %s1899 = sadd.s32 %s1897, 1
              $region66: #{feat_encode.1} parent=59 // loop_footer_branch
                %1896 = sbr.rel target = $region62
              $region67: #{feat_encode.1} parent=59 // loop_exit
                _
              %s1924 = sdiv.u32.pop %s1881, 6
              %s1925 = srem.u32.pop %s1881, 6
              %s1926 = smul.u32 %s1924, 6
              %s1927 = smul.u32 8, %s1926
              %s1928 = scalar_lea.vmem %s1874, %s1927 [#allocation2]
              %s1929 = smul.u32 8, %s1926
              %s1930 = scalar_lea.vmem %s1885, %s1929
              // While loop
              $region68: #{feat_encode.1} parent=59 // loop_pre_header
                _
              $region69: #{feat_encode.1} parent=59 // loop_header
                %s1932 = sphi 0, %s1934
                %p1933 = scmp.ge.s32.totalorder %s1932, %s1925
                %s1937 = sphi 0, %s1944
                %s1938 = sphi %s1928, %s1947
                %s1939 = sphi %s1930, %s1948
              $region70: #{feat_encode.1} parent=59 // loop_header_branch
                %1936 = sbr.rel (%p1933) target = $region74
              $region71: #{feat_encode.1} parent=59 // loop_body
                %v1940 = vld [vmem:[%s1938] sm:$0xff]
                %1941 = vst [vmem:[%s1939] sm:$0xff] %v1940
                %s1942 = sadd.s32 1, %s1937
                %p1943 = scmp.ge.s32.totalorder %s1942, %s1925
                %s1944 = scalar_select %p1943, 0, %s1942
                %s1945 = smul.u32 %s1944, 8
                %s1946 = smul.u32 %s1944, 8
                %s1947 = scalar_lea.vmem %s1928, %s1945 [#allocation2]
                %s1948 = scalar_lea.vmem %s1930, %s1946
              $region72: #{feat_encode.1} parent=59 // loop_footer
                %s1934 = sadd.s32 %s1932, 1
              $region73: #{feat_encode.1} parent=59 // loop_footer_branch
                %1931 = sbr.rel target = $region69
              $region74: #{feat_encode.1} parent=59 // loop_exit
                _
            $region60: #{feat_encode.1} parent=51 // pred_fallthru
              _
          $region52: #{feat_encode.1} parent=47 // pred_fallthru
            _
          %2008 = vnop
        $region48: #{feat_encode.1} parent=43 // pred_fallthru
          _
      $region44: #{feat_encode.1} parent=5 // pred_fallthru
        _
      %p2009 = scmp.le.s32.totalorder 2, %s12
      // Predicated region
      $region97: #{feat_encode.1} parent=5 // pred_check
        %p2010 = pneg %p2009
      $region98: #{feat_encode.1} parent=5 // pred_check_branch
        %2012 = sbr.rel (%p2010) target = $region100
      $region99: #{feat_encode.1} parent=5 // pred_region
        %s2013 = ssub.s32 %s12, 2
        // Predicated region
        $region101: #{feat_encode.1} parent=99 // pred_check
          %p2014 = pneg %p177
        $region102: #{feat_encode.1} parent=99 // pred_check_branch
          %2016 = sbr.rel (%p2014) target = $region104
        $region103: #{feat_encode.1} parent=99 // pred_region
          %s2017 = sand.u32 %s162, 1
          %s2018 = sand.u32 %s162, 1
          %s2019 = smul.addr %s2018, 48
          %s2020 = scalar_lea.vmem [#allocation2], %s2019
        $region104: #{feat_encode.1} parent=99 // pred_fallthru
          _
      $region100: #{feat_encode.1} parent=5 // pred_fallthru
        _
    $region6: #{feat_encode.1} parent=1 // loop_footer
      %s16 = sadd.s32 1, %s12
    $region7: #{feat_encode.1} parent=1 // loop_footer_branch
      %11 = sbr.rel target = $region3
    $region8: #{feat_encode.1} parent=1 // loop_exit
      _

</llo_original>
